<compile_context>
chip_gen: v7x
topology: tpu7x:2x2x1
jax: 0.10.0
libtpu: 0.0.40
codegen_flags: <defaults>
</compile_context>

<pallas_src>
import functools
import math

import jax
import jax.numpy as jnp
from jax.experimental import pallas as pl
from jax.experimental.pallas import tpu as pltpu


def decoder_layer_kernel(dec_ref, enc_ref, wslab_ref, vslab_ref,
                         out_ref, attn_ref,
                         s_scr, ctx_scr,
                         *, n_head, d_k, d_v, d_o, d_inner, row_offsets,
                         eps=1e-5):
    """One grid step = one batch chunk (whole batch by default), batch folded into M."""
    Bt = dec_ref.shape[0]
    Lq = dec_ref.shape[1]
    Lk = enc_ref.shape[1]
    Hk = n_head * d_k
    Hv = n_head * d_v
    inv_temp = jnp.float32(1.0 / math.sqrt(d_k))

    # Fold batch into the matmul M dimension (free layout-compatible reshape
    # when Lq/Lk are multiples of the 8-row sublane tile; correct regardless).
    x2 = dec_ref[...].reshape(Bt * Lq, d_o)      # (Bt*Lq, d_o)
    e2 = enc_ref[...].reshape(Bt * Lk, d_o)      # (Bt*Lk, d_o)

    # --- static slices into the lane-padded, 8-row-aligned weight slab ---
    off_wq, off_wkv, off_wfc, off_w1, off_w2 = row_offsets
    wq = wslab_ref[off_wq:off_wq + d_o, :Hk]                 # (d_o, H*d_k)
    wkv = wslab_ref[off_wkv:off_wkv + d_o, :Hk + Hv]         # (d_o, H*(d_k+d_v))
    wfc = wslab_ref[off_wfc:off_wfc + Hv, :d_o]              # (H*d_v, d_o)
    w1 = wslab_ref[off_w1:off_w1 + d_o, :d_inner]            # (d_o, d_inner)
    w2 = wslab_ref[off_w2:off_w2 + d_inner, :d_o]            # (d_inner, d_o)

    vecs = vslab_ref[...]                                    # (9, 128-padded)
    bq = vecs[0, :Hk]
    bkv = vecs[1, :Hk + Hv]
    bfc = vecs[2, :d_o]
    ln1g = vecs[3, :d_o]
    ln1b = vecs[4, :d_o]
    b1 = vecs[5, :d_inner]
    b2 = vecs[6, :d_o]
    ln2g = vecs[7, :d_o]
    ln2b = vecs[8, :d_o]

    # ---- fused projections: ONE Q matmul + ONE packed KV matmul on folded batch ----
    q_all = jnp.dot(x2, wq, preferred_element_type=jnp.float32) + bq       # (Bt*Lq, Hk)
    kv_all = jnp.dot(e2, wkv, preferred_element_type=jnp.float32) + bkv    # (Bt*Lk, Hk+Hv)
    k_all = kv_all[:, :Hk]
    v_all = kv_all[:, Hk:]

    # ---- per-(batch, head) scores written at static offsets into VMEM scratch ----
    # (no jnp.concatenate -> no relayout copies)
    for b in range(Bt):
        for h in range(n_head):
            qbh = q_all[b * Lq:(b + 1) * Lq, h * d_k:(h + 1) * d_k]        # (Lq, d_k)
            kbh = k_all[b * Lk:(b + 1) * Lk, h * d_k:(h + 1) * d_k]        # (Lk, d_k)
            sbh = jax.lax.dot_general(qbh, kbh, (((1,), (1,)), ((), ())),
                                      preferred_element_type=jnp.float32)
            r0 = (b * n_head + h) * Lq
            s_scr[r0:r0 + Lq, :] = sbh * inv_temp

    # ---- single softmax over all batches and heads ----
    s = s_scr[...]                                                         # (Bt*H*Lq, Lk)
    s = s - jnp.max(s, axis=-1, keepdims=True)
    e = jnp.exp(s)
    inv_den = pl.reciprocal(jnp.sum(e, axis=-1, keepdims=True), approx=False)
    s_scr[...] = e * inv_den                                               # probabilities

    # ---- per-(batch, head): store attn probs head-major + context into scratch ----
    for b in range(Bt):
        for h in range(n_head):
            r0 = (b * n_head + h) * Lq
            p_bh = s_scr[r0:r0 + Lq, :]                                    # (Lq, Lk)
            attn_ref[h, b, :, :] = p_bh
            v_bh = v_all[b * Lk:(b + 1) * Lk, h * d_v:(h + 1) * d_v]       # (Lk, d_v)
            ctx_scr[b * Lq:(b + 1) * Lq, h * d_v:(h + 1) * d_v] = jnp.dot(
                p_bh, v_bh, preferred_element_type=jnp.float32)

    # ---- ONE output projection matmul on the folded (Bt*Lq, H*d_v) context ----
    mha = jnp.dot(ctx_scr[...], wfc, preferred_element_type=jnp.float32) + bfc

    # residual + LayerNorm 1 (dropout = identity in eval mode)
    y = mha + x2
    mu = jnp.mean(y, axis=-1, keepdims=True)
    var = jnp.mean((y - mu) ** 2, axis=-1, keepdims=True)
    y = (y - mu) * jax.lax.rsqrt(var + eps) * ln1g + ln1b

    # ---- position-wise feed-forward (Conv1d k=1 == per-position matmul) ----
    hdd = jnp.maximum(jnp.dot(y, w1, preferred_element_type=jnp.float32) + b1, 0.0)
    f = jnp.dot(hdd, w2, preferred_element_type=jnp.float32) + b2
    z = f + y
    mu2 = jnp.mean(z, axis=-1, keepdims=True)
    var2 = jnp.mean((z - mu2) ** 2, axis=-1, keepdims=True)
    z = (z - mu2) * jax.lax.rsqrt(var2 + eps) * ln2g + ln2b

    out_ref[...] = z.reshape(Bt, Lq, d_o)


def _round_up(x, m):
    return ((x + m - 1) // m) * m


def pack_decoder_params(params, *, n_head, d_k, d_v):
    """Pack the 18 PyTorch-layout parameter tensors into 2 slabs.

    Weight slab: full-128-lane width, each matrix starting at an 8-aligned row.
    Vector slab: (9, 128-lane-padded).
    Returns (wslab, vslab, row_offsets).
    """
    d_o = params["wq"].shape[1]
    d_inner = params["w1"].shape[1]
    Hk, Hv = n_head * d_k, n_head * d_v

    # per-head (H, d_o, d) -> fused (d_o, H*d) so column block h is head h's weight
    wq = jnp.transpose(params["wq"], (1, 0, 2)).reshape(d_o, Hk)
    wk = jnp.transpose(params["wk"], (1, 0, 2)).reshape(d_o, Hk)
    wv = jnp.transpose(params["wv"], (1, 0, 2)).reshape(d_o, Hv)
    wkv = jnp.concatenate([wk, wv], axis=1)                  # (d_o, Hk+Hv)
    wfc = params["wfc"].reshape(Hv, d_o)                     # (H, d_v, d_o) -> (H*d_v, d_o)

    mats = [wq, wkv, wfc, params["w1"], params["w2"]]
    lane_w = _round_up(max(int(m.shape[1]) for m in mats), 128)   # full-lane-tile width

    blocks, offsets, r = [], [], 0
    for m in mats:
        rows = _round_up(int(m.shape[0]), 8)                      # 8-aligned row offsets
        blocks.append(jnp.pad(m, ((0, rows - m.shape[0]), (0, lane_w - m.shape[1]))))
        offsets.append(r)
        r += rows
    wslab = jnp.concatenate(blocks, axis=0).astype(jnp.float32)

    vec_list = [
        params["bq"][:, 0, :].reshape(Hk),
        jnp.concatenate([params["bk"][:, 0, :].reshape(Hk),
                         params["bv"][:, 0, :].reshape(Hv)]),
        params["bfc"].reshape(d_o),
        params["ln1_g"].reshape(d_o),
        params["ln1_b"].reshape(d_o),
        params["b1"].reshape(d_inner),
        params["b2"].reshape(d_o),
        params["ln2_g"].reshape(d_o),
        params["ln2_b"].reshape(d_o),
    ]
    vlane = _round_up(max(int(v.shape[0]) for v in vec_list), 128)
    vslab = jnp.stack([jnp.pad(v, (0, vlane - v.shape[0])) for v in vec_list],
                      axis=0).astype(jnp.float32)
    return wslab, vslab, tuple(offsets)


def decoder_layer(dec_input, enc_output, params, *, n_head, d_k, d_v,
                  batch_blocks=1):
    """batch_blocks=1 (default) for single-TC v5e/v6e; use 2 on v7x (2 TCs/chip)."""
    B, Lq, d_o = dec_input.shape
    _, Lk, _ = enc_output.shape
    d_inner = params["w1"].shape[1]
    Hk, Hv = n_head * d_k, n_head * d_v
    assert B % batch_blocks == 0, "batch must divide evenly into batch_blocks"
    Bt = B // batch_blocks

    wslab, vslab, row_offsets = pack_decoder_params(params, n_head=n_head,
                                                    d_k=d_k, d_v=d_v)

    in_specs = [
        pl.BlockSpec((Bt, Lq, d_o), lambda i: (i, 0, 0)),
        pl.BlockSpec((Bt, Lk, d_o), lambda i: (i, 0, 0)),
        pl.BlockSpec(wslab.shape, lambda i: (0, 0)),   # resident across grid steps
        pl.BlockSpec(vslab.shape, lambda i: (0, 0)),
    ]
    out_specs = (
        pl.BlockSpec((Bt, Lq, d_o), lambda i: (i, 0, 0)),
        # head-major attention output, written per (head, batch) inside the kernel
        pl.BlockSpec((n_head, Bt, Lq, Lk), lambda i: (0, i, 0, 0)),
    )
    out_shape = (
        jax.ShapeDtypeStruct((B, Lq, d_o), jnp.float32),
        jax.ShapeDtypeStruct((n_head, B, Lq, Lk), jnp.float32),
    )
    scratch_shapes = [
        pltpu.VMEM((Bt * n_head * Lq, Lk), jnp.float32),   # head/batch-stacked scores
        pltpu.VMEM((Bt * Lq, Hv), jnp.float32),            # concatenated per-head context
    ]

    flops = 2 * B * (Lq * d_o * Hk                 # Q projection
                     + Lk * d_o * (Hk + Hv)        # packed KV projection
                     + n_head * Lq * Lk * (d_k + d_v)   # scores + context
                     + Lq * Hv * d_o               # output projection
                     + 2 * Lq * d_o * d_inner)     # FFN
    cost = pl.CostEstimate(
        flops=flops,
        transcendentals=B * n_head * Lq * Lk + 2 * B * Lq,   # exp + rsqrt
        bytes_accessed=4 * (B * Lq * d_o * 2 + B * Lk * d_o
                            + wslab.size + vslab.size + n_head * B * Lq * Lk),
    )

    kernel = functools.partial(decoder_layer_kernel, n_head=n_head, d_k=d_k,
                               d_v=d_v, d_o=d_o, d_inner=d_inner,
                               row_offsets=row_offsets)
    out, attn = pl.pallas_call(
        kernel,
        grid=(batch_blocks,),
        in_specs=in_specs,
        out_specs=out_specs,
        out_shape=out_shape,
        scratch_shapes=scratch_shapes,
        compiler_params=pltpu.CompilerParams(
            dimension_semantics=("parallel",),   # both v7x TCs get work when batch_blocks=2
        ),
        cost_estimate=cost,
    )(dec_input, enc_output, wslab, vslab)

    # attn is already head-major: plain contiguous reshape, no transpose copy.
    attn_flat = attn.reshape(n_head * B, Lq, Lk)
    return out, attn_flat


def make_params(key, d_o, d_inner, n_head, d_k, d_v):
    ks = jax.random.split(key, 10)
    scale = 0.1

    def rnd(k, shape):
        return (scale * jax.random.normal(k, shape)).astype(jnp.float32)

    return {
        # per-head projection weights (H, d_o, d_k/d_v), biases (H, 1, d_k/d_v)
        "wq": rnd(ks[0], (n_head, d_o, d_k)), "bq": rnd(ks[1], (n_head, 1, d_k)),
        "wk": rnd(ks[2], (n_head, d_o, d_k)), "bk": rnd(ks[3], (n_head, 1, d_k)),
        "wv": rnd(ks[4], (n_head, d_o, d_v)), "bv": rnd(ks[5], (n_head, 1, d_v)),
        # output projection split per head: (H, d_v, d_o)
        "wfc": rnd(ks[6], (n_head, d_v, d_o)), "bfc": rnd(ks[7], (1, d_o)),
        "ln1_g": jnp.ones((1, d_o), jnp.float32), "ln1_b": jnp.zeros((1, d_o), jnp.float32),
        # FFN: Conv1d(d_o, d_inner, 1) and Conv1d(d_inner, d_o, 1) as matmuls
        "w1": rnd(ks[8], (d_o, d_inner)), "b1": jnp.zeros((1, d_inner), jnp.float32),
        "w2": rnd(ks[9], (d_inner, d_o)), "b2": jnp.zeros((1, d_o), jnp.float32),
        "ln2_g": jnp.ones((1, d_o), jnp.float32), "ln2_b": jnp.zeros((1, d_o), jnp.float32),
    }


def reference(dec, enc, params, n_head, d_k, d_v, eps=1e-5):
    """Pure-JAX reference mirroring the PyTorch forward (eval mode)."""
    def layer_norm(x, g, b):
        mu = x.mean(-1, keepdims=True)
        var = ((x - mu) ** 2).mean(-1, keepdims=True)
        return (x - mu) / jnp.sqrt(var + eps) * g[0] + b[0]

    q = jnp.einsum("bld,hdk->bhlk", dec, params["wq"]) + params["bq"][None, :, 0][:, :, None, :]
    k = jnp.einsum("bld,hdk->bhlk", enc, params["wk"]) + params["bk"][None, :, 0][:, :, None, :]
    v = jnp.einsum("bld,hdk->bhlk", enc, params["wv"]) + params["bv"][None, :, 0][:, :, None, :]
    s = jnp.einsum("bhqd,bhkd->bhqk", q, k) / math.sqrt(d_k)
    p = jax.nn.softmax(s, axis=-1)
    ctx = jnp.einsum("bhqk,bhkd->bhqd", p, v)
    mha = jnp.einsum("bhqd,hdo->bqo", ctx, params["wfc"]) + params["bfc"][0]
    y = layer_norm(mha + dec, params["ln1_g"], params["ln1_b"])
    h = jax.nn.relu(y @ params["w1"] + params["b1"][0])
    f = h @ params["w2"] + params["b2"][0]
    z = layer_norm(f + y, params["ln2_g"], params["ln2_b"])
    B = dec.shape[0]
    p_flat = jnp.transpose(p, (1, 0, 2, 3)).reshape(n_head * B, dec.shape[1], enc.shape[1])
    return z, p_flat


if __name__ == "__main__":
    B, Lq, Lk = 2, 8, 16
    d_o, d_inner, n_head, d_k, d_v = 32, 64, 4, 8, 8

    key = jax.random.PRNGKey(0)
    k_dec, k_enc, k_par = jax.random.split(key, 3)
    dec_input = jax.random.normal(k_dec, (B, Lq, d_o), dtype=jnp.float32)
    enc_output = jax.random.normal(k_enc, (B, Lk, d_o), dtype=jnp.float32)
    params = make_params(k_par, d_o, d_inner, n_head, d_k, d_v)

    # TODO(synk): nn.Dropout layers are identity here (inference / eval mode).
    out, attn = decoder_layer(dec_input, enc_output, params,
                              n_head=n_head, d_k=d_k, d_v=d_v)
    out = jax.block_until_ready(out)
    attn = jax.block_until_ready(attn)

    ref_out, ref_attn = reference(dec_input, enc_output, params, n_head, d_k, d_v)
    assert out.shape == (B, Lq, d_o) and attn.shape == (n_head * B, Lq, Lk)
    assert jnp.allclose(out, ref_out, atol=1e-4, rtol=1e-4)
    assert jnp.allclose(attn, ref_attn, atol=1e-4, rtol=1e-4)

    print("KERNEL_OK")
</pallas_src>

<mosaic_0001>
module attributes {stable_mosaic.version = 11 : i64} {
  func.func @decoder_layer_kernel(%arg0: i32, %arg1: memref<2x8x32xf32, #tpu.memory_space<vmem>>, %arg2: memref<2x16x32xf32, #tpu.memory_space<vmem>>, %arg3: memref<192x128xf32, #tpu.memory_space<vmem>>, %arg4: memref<9x128xf32, #tpu.memory_space<vmem>>, %arg5: memref<2x8x32xf32, #tpu.memory_space<vmem>>, %arg6: memref<4x2x8x16xf32, #tpu.memory_space<vmem>>, %arg7: memref<64x16xf32, #tpu.memory_space<vmem>>, %arg8: memref<16x32xf32, #tpu.memory_space<vmem>>) attributes {dimension_semantics = [#tpu.dimension_semantics<parallel>], iteration_bounds = array<i64: 1>, scalar_prefetch = 0 : i64, scratch_operands = 2 : i64, tpu.core_type = #tpu.core_type<tc>, window_params = [{transform_indices = @transform_0, window_bounds = array<i64: 2, 8, 32>}, {transform_indices = @transform_1, window_bounds = array<i64: 2, 16, 32>}, {pipeline_mode = #tpu.pipeline_mode<synchronous>, transform_indices = @transform_2, window_bounds = array<i64: 192, 128>}, {pipeline_mode = #tpu.pipeline_mode<synchronous>, transform_indices = @transform_3, window_bounds = array<i64: 9, 128>}, {transform_indices = @transform_4, window_bounds = array<i64: 2, 8, 32>}, {transform_indices = @transform_5, window_bounds = array<i64: 4, 2, 8, 16>}]} {
    %c0 = arith.constant 0 : index
    %c0_0 = arith.constant 0 : index
    %c0_1 = arith.constant 0 : index
    %0 = vector.load %arg1[%c0, %c0_0, %c0_1] : memref<2x8x32xf32, #tpu.memory_space<vmem>>, vector<2x8x32xf32>
    %1 = vector.shape_cast %0 : vector<2x8x32xf32> to vector<16x32xf32>
    %c0_2 = arith.constant 0 : index
    %c0_3 = arith.constant 0 : index
    %c0_4 = arith.constant 0 : index
    %2 = vector.load %arg2[%c0_2, %c0_3, %c0_4] : memref<2x16x32xf32, #tpu.memory_space<vmem>>, vector<2x16x32xf32>
    %3 = vector.shape_cast %2 : vector<2x16x32xf32> to vector<32x32xf32>
    %c0_5 = arith.constant 0 : index
    %c0_6 = arith.constant 0 : index
    %4 = vector.load %arg3[%c0_5, %c0_6] : memref<192x128xf32, #tpu.memory_space<vmem>>, vector<32x32xf32>
    %c32 = arith.constant 32 : index
    %c0_7 = arith.constant 0 : index
    %5 = vector.load %arg3[%c32, %c0_7] : memref<192x128xf32, #tpu.memory_space<vmem>>, vector<32x64xf32>
    %c64 = arith.constant 64 : index
    %c0_8 = arith.constant 0 : index
    %6 = vector.load %arg3[%c64, %c0_8] : memref<192x128xf32, #tpu.memory_space<vmem>>, vector<32x32xf32>
    %c96 = arith.constant 96 : index
    %c0_9 = arith.constant 0 : index
    %7 = vector.load %arg3[%c96, %c0_9] : memref<192x128xf32, #tpu.memory_space<vmem>>, vector<32x64xf32>
    %c128 = arith.constant 128 : index
    %c0_10 = arith.constant 0 : index
    %8 = vector.load %arg3[%c128, %c0_10] : memref<192x128xf32, #tpu.memory_space<vmem>>, vector<64x32xf32>
    %c0_11 = arith.constant 0 : index
    %c0_12 = arith.constant 0 : index
    %9 = vector.load %arg4[%c0_11, %c0_12] : memref<9x128xf32, #tpu.memory_space<vmem>>, vector<9x128xf32>
    %10 = vector.extract_strided_slice %9 {offsets = [0, 0], sizes = [1, 32], strides = [1, 1]} : vector<9x128xf32> to vector<1x32xf32>
    %11 = vector.shape_cast %10 : vector<1x32xf32> to vector<32xf32>
    %12 = vector.extract_strided_slice %9 {offsets = [1, 0], sizes = [1, 64], strides = [1, 1]} : vector<9x128xf32> to vector<1x64xf32>
    %13 = vector.shape_cast %12 : vector<1x64xf32> to vector<64xf32>
    %14 = vector.extract_strided_slice %9 {offsets = [2, 0], sizes = [1, 32], strides = [1, 1]} : vector<9x128xf32> to vector<1x32xf32>
    %15 = vector.shape_cast %14 : vector<1x32xf32> to vector<32xf32>
    %16 = vector.extract_strided_slice %9 {offsets = [3, 0], sizes = [1, 32], strides = [1, 1]} : vector<9x128xf32> to vector<1x32xf32>
    %17 = vector.shape_cast %16 : vector<1x32xf32> to vector<32xf32>
    %18 = vector.extract_strided_slice %9 {offsets = [4, 0], sizes = [1, 32], strides = [1, 1]} : vector<9x128xf32> to vector<1x32xf32>
    %19 = vector.shape_cast %18 : vector<1x32xf32> to vector<32xf32>
    %20 = vector.extract_strided_slice %9 {offsets = [5, 0], sizes = [1, 64], strides = [1, 1]} : vector<9x128xf32> to vector<1x64xf32>
    %21 = vector.shape_cast %20 : vector<1x64xf32> to vector<64xf32>
    %22 = vector.extract_strided_slice %9 {offsets = [6, 0], sizes = [1, 32], strides = [1, 1]} : vector<9x128xf32> to vector<1x32xf32>
    %23 = vector.shape_cast %22 : vector<1x32xf32> to vector<32xf32>
    %24 = vector.extract_strided_slice %9 {offsets = [7, 0], sizes = [1, 32], strides = [1, 1]} : vector<9x128xf32> to vector<1x32xf32>
    %25 = vector.shape_cast %24 : vector<1x32xf32> to vector<32xf32>
    %26 = vector.extract_strided_slice %9 {offsets = [8, 0], sizes = [1, 32], strides = [1, 1]} : vector<9x128xf32> to vector<1x32xf32>
    %27 = vector.shape_cast %26 : vector<1x32xf32> to vector<32xf32>
    %cst = arith.constant dense<0.000000e+00> : vector<16x32xf32>
    %28 = tpu.matmul %1, %4, %cst {dimension_numbers = #tpu.dot_dimension_numbers<[1], [0], [0], [1], [0, 0, 1, 1], [], []>} : vector<16x32xf32>, vector<32x32xf32>, vector<16x32xf32> -> vector<16x32xf32>
    %29 = vector.shape_cast %11 : vector<32xf32> to vector<1x32xf32>
    %30 = vector.broadcast %29 : vector<1x32xf32> to vector<16x32xf32>
    %31 = arith.addf %28, %30 : vector<16x32xf32>
    %cst_13 = arith.constant dense<0.000000e+00> : vector<32x64xf32>
    %32 = tpu.matmul %3, %5, %cst_13 {dimension_numbers = #tpu.dot_dimension_numbers<[1], [0], [0], [1], [0, 0, 1, 1], [], []>} : vector<32x32xf32>, vector<32x64xf32>, vector<32x64xf32> -> vector<32x64xf32>
    %33 = vector.shape_cast %13 : vector<64xf32> to vector<1x64xf32>
    %34 = vector.broadcast %33 : vector<1x64xf32> to vector<32x64xf32>
    %35 = arith.addf %32, %34 : vector<32x64xf32>
    %36 = vector.extract_strided_slice %35 {offsets = [0, 0], sizes = [32, 32], strides = [1, 1]} : vector<32x64xf32> to vector<32x32xf32>
    %37 = vector.extract_strided_slice %35 {offsets = [0, 32], sizes = [32, 32], strides = [1, 1]} : vector<32x64xf32> to vector<32x32xf32>
    %38 = vector.extract_strided_slice %31 {offsets = [0, 0], sizes = [8, 8], strides = [1, 1]} : vector<16x32xf32> to vector<8x8xf32>
    %39 = vector.extract_strided_slice %36 {offsets = [0, 0], sizes = [16, 8], strides = [1, 1]} : vector<32x32xf32> to vector<16x8xf32>
    %cst_14 = arith.constant dense<0.000000e+00> : vector<8x16xf32>
    %40 = tpu.matmul %38, %39, %cst_14 {dimension_numbers = #tpu.dot_dimension_numbers<[1], [1], [0], [0], [0, 0, 1, 0], [], []>} : vector<8x8xf32>, vector<16x8xf32>, vector<8x16xf32> -> vector<8x16xf32>
    %cst_15 = arith.constant 0.353553385 : f32
    %41 = vector.broadcast %cst_15 : f32 to vector<8x16xf32>
    %42 = arith.mulf %40, %41 : vector<8x16xf32>
    %c0_16 = arith.constant 0 : index
    %c0_17 = arith.constant 0 : index
    %43 = vector.load %arg7[%c0_16, %c0_17] : memref<64x16xf32, #tpu.memory_space<vmem>>, vector<8x16xf32>
    tpu.vector_store %arg7[%c0_16, %c0_17], %42 {strides = array<i32>} : memref<64x16xf32, #tpu.memory_space<vmem>>, vector<8x16xf32>,
    %44 = vector.extract_strided_slice %31 {offsets = [0, 8], sizes = [8, 8], strides = [1, 1]} : vector<16x32xf32> to vector<8x8xf32>
    %45 = vector.extract_strided_slice %36 {offsets = [0, 8], sizes = [16, 8], strides = [1, 1]} : vector<32x32xf32> to vector<16x8xf32>
    %cst_18 = arith.constant dense<0.000000e+00> : vector<8x16xf32>
    %46 = tpu.matmul %44, %45, %cst_18 {dimension_numbers = #tpu.dot_dimension_numbers<[1], [1], [0], [0], [0, 0, 1, 0], [], []>} : vector<8x8xf32>, vector<16x8xf32>, vector<8x16xf32> -> vector<8x16xf32>
    %cst_19 = arith.constant 0.353553385 : f32
    %47 = vector.broadcast %cst_19 : f32 to vector<8x16xf32>
    %48 = arith.mulf %46, %47 : vector<8x16xf32>
    %c8 = arith.constant 8 : index
    %c0_20 = arith.constant 0 : index
    %49 = vector.load %arg7[%c8, %c0_20] : memref<64x16xf32, #tpu.memory_space<vmem>>, vector<8x16xf32>
    tpu.vector_store %arg7[%c8, %c0_20], %48 {strides = array<i32>} : memref<64x16xf32, #tpu.memory_space<vmem>>, vector<8x16xf32>,
    %50 = vector.extract_strided_slice %31 {offsets = [0, 16], sizes = [8, 8], strides = [1, 1]} : vector<16x32xf32> to vector<8x8xf32>
    %51 = vector.extract_strided_slice %36 {offsets = [0, 16], sizes = [16, 8], strides = [1, 1]} : vector<32x32xf32> to vector<16x8xf32>
    %cst_21 = arith.constant dense<0.000000e+00> : vector<8x16xf32>
    %52 = tpu.matmul %50, %51, %cst_21 {dimension_numbers = #tpu.dot_dimension_numbers<[1], [1], [0], [0], [0, 0, 1, 0], [], []>} : vector<8x8xf32>, vector<16x8xf32>, vector<8x16xf32> -> vector<8x16xf32>
    %cst_22 = arith.constant 0.353553385 : f32
    %53 = vector.broadcast %cst_22 : f32 to vector<8x16xf32>
    %54 = arith.mulf %52, %53 : vector<8x16xf32>
    %c16 = arith.constant 16 : index
    %c0_23 = arith.constant 0 : index
    %55 = vector.load %arg7[%c16, %c0_23] : memref<64x16xf32, #tpu.memory_space<vmem>>, vector<8x16xf32>
    tpu.vector_store %arg7[%c16, %c0_23], %54 {strides = array<i32>} : memref<64x16xf32, #tpu.memory_space<vmem>>, vector<8x16xf32>,
    %56 = vector.extract_strided_slice %31 {offsets = [0, 24], sizes = [8, 8], strides = [1, 1]} : vector<16x32xf32> to vector<8x8xf32>
    %57 = vector.extract_strided_slice %36 {offsets = [0, 24], sizes = [16, 8], strides = [1, 1]} : vector<32x32xf32> to vector<16x8xf32>
    %cst_24 = arith.constant dense<0.000000e+00> : vector<8x16xf32>
    %58 = tpu.matmul %56, %57, %cst_24 {dimension_numbers = #tpu.dot_dimension_numbers<[1], [1], [0], [0], [0, 0, 1, 0], [], []>} : vector<8x8xf32>, vector<16x8xf32>, vector<8x16xf32> -> vector<8x16xf32>
    %cst_25 = arith.constant 0.353553385 : f32
    %59 = vector.broadcast %cst_25 : f32 to vector<8x16xf32>
    %60 = arith.mulf %58, %59 : vector<8x16xf32>
    %c24 = arith.constant 24 : index
    %c0_26 = arith.constant 0 : index
    %61 = vector.load %arg7[%c24, %c0_26] : memref<64x16xf32, #tpu.memory_space<vmem>>, vector<8x16xf32>
    tpu.vector_store %arg7[%c24, %c0_26], %60 {strides = array<i32>} : memref<64x16xf32, #tpu.memory_space<vmem>>, vector<8x16xf32>,
    %62 = vector.extract_strided_slice %31 {offsets = [8, 0], sizes = [8, 8], strides = [1, 1]} : vector<16x32xf32> to vector<8x8xf32>
    %63 = vector.extract_strided_slice %36 {offsets = [16, 0], sizes = [16, 8], strides = [1, 1]} : vector<32x32xf32> to vector<16x8xf32>
    %cst_27 = arith.constant dense<0.000000e+00> : vector<8x16xf32>
    %64 = tpu.matmul %62, %63, %cst_27 {dimension_numbers = #tpu.dot_dimension_numbers<[1], [1], [0], [0], [0, 0, 1, 0], [], []>} : vector<8x8xf32>, vector<16x8xf32>, vector<8x16xf32> -> vector<8x16xf32>
    %cst_28 = arith.constant 0.353553385 : f32
    %65 = vector.broadcast %cst_28 : f32 to vector<8x16xf32>
    %66 = arith.mulf %64, %65 : vector<8x16xf32>
    %c32_29 = arith.constant 32 : index
    %c0_30 = arith.constant 0 : index
    %67 = vector.load %arg7[%c32_29, %c0_30] : memref<64x16xf32, #tpu.memory_space<vmem>>, vector<8x16xf32>
    tpu.vector_store %arg7[%c32_29, %c0_30], %66 {strides = array<i32>} : memref<64x16xf32, #tpu.memory_space<vmem>>, vector<8x16xf32>,
    %68 = vector.extract_strided_slice %31 {offsets = [8, 8], sizes = [8, 8], strides = [1, 1]} : vector<16x32xf32> to vector<8x8xf32>
    %69 = vector.extract_strided_slice %36 {offsets = [16, 8], sizes = [16, 8], strides = [1, 1]} : vector<32x32xf32> to vector<16x8xf32>
    %cst_31 = arith.constant dense<0.000000e+00> : vector<8x16xf32>
    %70 = tpu.matmul %68, %69, %cst_31 {dimension_numbers = #tpu.dot_dimension_numbers<[1], [1], [0], [0], [0, 0, 1, 0], [], []>} : vector<8x8xf32>, vector<16x8xf32>, vector<8x16xf32> -> vector<8x16xf32>
    %cst_32 = arith.constant 0.353553385 : f32
    %71 = vector.broadcast %cst_32 : f32 to vector<8x16xf32>
    %72 = arith.mulf %70, %71 : vector<8x16xf32>
    %c40 = arith.constant 40 : index
    %c0_33 = arith.constant 0 : index
    %73 = vector.load %arg7[%c40, %c0_33] : memref<64x16xf32, #tpu.memory_space<vmem>>, vector<8x16xf32>
    tpu.vector_store %arg7[%c40, %c0_33], %72 {strides = array<i32>} : memref<64x16xf32, #tpu.memory_space<vmem>>, vector<8x16xf32>,
    %74 = vector.extract_strided_slice %31 {offsets = [8, 16], sizes = [8, 8], strides = [1, 1]} : vector<16x32xf32> to vector<8x8xf32>
    %75 = vector.extract_strided_slice %36 {offsets = [16, 16], sizes = [16, 8], strides = [1, 1]} : vector<32x32xf32> to vector<16x8xf32>
    %cst_34 = arith.constant dense<0.000000e+00> : vector<8x16xf32>
    %76 = tpu.matmul %74, %75, %cst_34 {dimension_numbers = #tpu.dot_dimension_numbers<[1], [1], [0], [0], [0, 0, 1, 0], [], []>} : vector<8x8xf32>, vector<16x8xf32>, vector<8x16xf32> -> vector<8x16xf32>
    %cst_35 = arith.constant 0.353553385 : f32
    %77 = vector.broadcast %cst_35 : f32 to vector<8x16xf32>
    %78 = arith.mulf %76, %77 : vector<8x16xf32>
    %c48 = arith.constant 48 : index
    %c0_36 = arith.constant 0 : index
    %79 = vector.load %arg7[%c48, %c0_36] : memref<64x16xf32, #tpu.memory_space<vmem>>, vector<8x16xf32>
    tpu.vector_store %arg7[%c48, %c0_36], %78 {strides = array<i32>} : memref<64x16xf32, #tpu.memory_space<vmem>>, vector<8x16xf32>,
    %80 = vector.extract_strided_slice %31 {offsets = [8, 24], sizes = [8, 8], strides = [1, 1]} : vector<16x32xf32> to vector<8x8xf32>
    %81 = vector.extract_strided_slice %36 {offsets = [16, 24], sizes = [16, 8], strides = [1, 1]} : vector<32x32xf32> to vector<16x8xf32>
    %cst_37 = arith.constant dense<0.000000e+00> : vector<8x16xf32>
    %82 = tpu.matmul %80, %81, %cst_37 {dimension_numbers = #tpu.dot_dimension_numbers<[1], [1], [0], [0], [0, 0, 1, 0], [], []>} : vector<8x8xf32>, vector<16x8xf32>, vector<8x16xf32> -> vector<8x16xf32>
    %cst_38 = arith.constant 0.353553385 : f32
    %83 = vector.broadcast %cst_38 : f32 to vector<8x16xf32>
    %84 = arith.mulf %82, %83 : vector<8x16xf32>
    %c56 = arith.constant 56 : index
    %c0_39 = arith.constant 0 : index
    %85 = vector.load %arg7[%c56, %c0_39] : memref<64x16xf32, #tpu.memory_space<vmem>>, vector<8x16xf32>
    tpu.vector_store %arg7[%c56, %c0_39], %84 {strides = array<i32>} : memref<64x16xf32, #tpu.memory_space<vmem>>, vector<8x16xf32>,
    %c0_40 = arith.constant 0 : index
    %c0_41 = arith.constant 0 : index
    %86 = vector.load %arg7[%c0_40, %c0_41] : memref<64x16xf32, #tpu.memory_space<vmem>>, vector<64x16xf32>
    %cst_42 = arith.constant dense<0xFF800000> : vector<64xf32>
    %87 = vector.multi_reduction <maximumf>, %86, %cst_42 [1] : vector<64x16xf32> to vector<64xf32>
    %88 = vector.shape_cast %87 : vector<64xf32> to vector<64x1xf32>
    %89 = vector.broadcast %88 : vector<64x1xf32> to vector<64x16xf32>
    %90 = arith.subf %86, %89 : vector<64x16xf32>
    %91 = math.exp %90 : vector<64x16xf32>
    %cst_43 = arith.constant dense<0.000000e+00> : vector<64xf32>
    %92 = vector.multi_reduction <add>, %91, %cst_43 [1] : vector<64x16xf32> to vector<64xf32>
    %93 = vector.shape_cast %92 : vector<64xf32> to vector<64x1xf32>
    %94 = tpu.reciprocal %93 : vector<64x1xf32> -> vector<64x1xf32>
    %95 = vector.broadcast %94 : vector<64x1xf32> to vector<64x16xf32>
    %96 = arith.mulf %91, %95 : vector<64x16xf32>
    %c0_44 = arith.constant 0 : index
    %c0_45 = arith.constant 0 : index
    %97 = vector.load %arg7[%c0_44, %c0_45] : memref<64x16xf32, #tpu.memory_space<vmem>>, vector<64x16xf32>
    tpu.vector_store %arg7[%c0_44, %c0_45], %96 {strides = array<i32>} : memref<64x16xf32, #tpu.memory_space<vmem>>, vector<64x16xf32>,
    %c0_46 = arith.constant 0 : index
    %c0_47 = arith.constant 0 : index
    %98 = vector.load %arg7[%c0_46, %c0_47] : memref<64x16xf32, #tpu.memory_space<vmem>>, vector<8x16xf32>
    %c0_48 = arith.constant 0 : index
    %c0_49 = arith.constant 0 : index
    %c0_50 = arith.constant 0 : index
    %c0_51 = arith.constant 0 : index
    %99 = vector.load %arg6[%c0_48, %c0_49, %c0_50, %c0_51] : memref<4x2x8x16xf32, #tpu.memory_space<vmem>>, vector<1x1x8x16xf32>
    %100 = vector.shape_cast %99 : vector<1x1x8x16xf32> to vector<8x16xf32>
    %101 = vector.shape_cast %98 : vector<8x16xf32> to vector<1x1x8x16xf32>
    tpu.vector_store %arg6[%c0_48, %c0_49, %c0_50, %c0_51], %101 {strides = array<i32>} : memref<4x2x8x16xf32, #tpu.memory_space<vmem>>, vector<1x1x8x16xf32>,
    %102 = vector.extract_strided_slice %37 {offsets = [0, 0], sizes = [16, 8], strides = [1, 1]} : vector<32x32xf32> to vector<16x8xf32>
    %cst_52 = arith.constant dense<0.000000e+00> : vector<8x8xf32>
    %103 = tpu.matmul %98, %102, %cst_52 {dimension_numbers = #tpu.dot_dimension_numbers<[1], [0], [0], [1], [0, 0, 1, 1], [], []>} : vector<8x16xf32>, vector<16x8xf32>, vector<8x8xf32> -> vector<8x8xf32>
    %c0_53 = arith.constant 0 : index
    %c0_54 = arith.constant 0 : index
    %104 = vector.load %arg8[%c0_53, %c0_54] : memref<16x32xf32, #tpu.memory_space<vmem>>, vector<8x8xf32>
    tpu.vector_store %arg8[%c0_53, %c0_54], %103 {strides = array<i32>} : memref<16x32xf32, #tpu.memory_space<vmem>>, vector<8x8xf32>,
    %c8_55 = arith.constant 8 : index
    %c0_56 = arith.constant 0 : index
    %105 = vector.load %arg7[%c8_55, %c0_56] : memref<64x16xf32, #tpu.memory_space<vmem>>, vector<8x16xf32>
    %c1 = arith.constant 1 : index
    %c0_57 = arith.constant 0 : index
    %c0_58 = arith.constant 0 : index
    %c0_59 = arith.constant 0 : index
    %106 = vector.load %arg6[%c1, %c0_57, %c0_58, %c0_59] : memref<4x2x8x16xf32, #tpu.memory_space<vmem>>, vector<1x1x8x16xf32>
    %107 = vector.shape_cast %106 : vector<1x1x8x16xf32> to vector<8x16xf32>
    %108 = vector.shape_cast %105 : vector<8x16xf32> to vector<1x1x8x16xf32>
    tpu.vector_store %arg6[%c1, %c0_57, %c0_58, %c0_59], %108 {strides = array<i32>} : memref<4x2x8x16xf32, #tpu.memory_space<vmem>>, vector<1x1x8x16xf32>,
    %109 = vector.extract_strided_slice %37 {offsets = [0, 8], sizes = [16, 8], strides = [1, 1]} : vector<32x32xf32> to vector<16x8xf32>
    %cst_60 = arith.constant dense<0.000000e+00> : vector<8x8xf32>
    %110 = tpu.matmul %105, %109, %cst_60 {dimension_numbers = #tpu.dot_dimension_numbers<[1], [0], [0], [1], [0, 0, 1, 1], [], []>} : vector<8x16xf32>, vector<16x8xf32>, vector<8x8xf32> -> vector<8x8xf32>
    %c0_61 = arith.constant 0 : index
    %c8_62 = arith.constant 8 : index
    %111 = vector.load %arg8[%c0_61, %c8_62] : memref<16x32xf32, #tpu.memory_space<vmem>>, vector<8x8xf32>
    tpu.vector_store %arg8[%c0_61, %c8_62], %110 {strides = array<i32>} : memref<16x32xf32, #tpu.memory_space<vmem>>, vector<8x8xf32>,
    %c16_63 = arith.constant 16 : index
    %c0_64 = arith.constant 0 : index
    %112 = vector.load %arg7[%c16_63, %c0_64] : memref<64x16xf32, #tpu.memory_space<vmem>>, vector<8x16xf32>
    %c2 = arith.constant 2 : index
    %c0_65 = arith.constant 0 : index
    %c0_66 = arith.constant 0 : index
    %c0_67 = arith.constant 0 : index
    %113 = vector.load %arg6[%c2, %c0_65, %c0_66, %c0_67] : memref<4x2x8x16xf32, #tpu.memory_space<vmem>>, vector<1x1x8x16xf32>
    %114 = vector.shape_cast %113 : vector<1x1x8x16xf32> to vector<8x16xf32>
    %115 = vector.shape_cast %112 : vector<8x16xf32> to vector<1x1x8x16xf32>
    tpu.vector_store %arg6[%c2, %c0_65, %c0_66, %c0_67], %115 {strides = array<i32>} : memref<4x2x8x16xf32, #tpu.memory_space<vmem>>, vector<1x1x8x16xf32>,
    %116 = vector.extract_strided_slice %37 {offsets = [0, 16], sizes = [16, 8], strides = [1, 1]} : vector<32x32xf32> to vector<16x8xf32>
    %cst_68 = arith.constant dense<0.000000e+00> : vector<8x8xf32>
    %117 = tpu.matmul %112, %116, %cst_68 {dimension_numbers = #tpu.dot_dimension_numbers<[1], [0], [0], [1], [0, 0, 1, 1], [], []>} : vector<8x16xf32>, vector<16x8xf32>, vector<8x8xf32> -> vector<8x8xf32>
    %c0_69 = arith.constant 0 : index
    %c16_70 = arith.constant 16 : index
    %118 = vector.load %arg8[%c0_69, %c16_70] : memref<16x32xf32, #tpu.memory_space<vmem>>, vector<8x8xf32>
    tpu.vector_store %arg8[%c0_69, %c16_70], %117 {strides = array<i32>} : memref<16x32xf32, #tpu.memory_space<vmem>>, vector<8x8xf32>,
    %c24_71 = arith.constant 24 : index
    %c0_72 = arith.constant 0 : index
    %119 = vector.load %arg7[%c24_71, %c0_72] : memref<64x16xf32, #tpu.memory_space<vmem>>, vector<8x16xf32>
    %c3 = arith.constant 3 : index
    %c0_73 = arith.constant 0 : index
    %c0_74 = arith.constant 0 : index
    %c0_75 = arith.constant 0 : index
    %120 = vector.load %arg6[%c3, %c0_73, %c0_74, %c0_75] : memref<4x2x8x16xf32, #tpu.memory_space<vmem>>, vector<1x1x8x16xf32>
    %121 = vector.shape_cast %120 : vector<1x1x8x16xf32> to vector<8x16xf32>
    %122 = vector.shape_cast %119 : vector<8x16xf32> to vector<1x1x8x16xf32>
    tpu.vector_store %arg6[%c3, %c0_73, %c0_74, %c0_75], %122 {strides = array<i32>} : memref<4x2x8x16xf32, #tpu.memory_space<vmem>>, vector<1x1x8x16xf32>,
    %123 = vector.extract_strided_slice %37 {offsets = [0, 24], sizes = [16, 8], strides = [1, 1]} : vector<32x32xf32> to vector<16x8xf32>
    %cst_76 = arith.constant dense<0.000000e+00> : vector<8x8xf32>
    %124 = tpu.matmul %119, %123, %cst_76 {dimension_numbers = #tpu.dot_dimension_numbers<[1], [0], [0], [1], [0, 0, 1, 1], [], []>} : vector<8x16xf32>, vector<16x8xf32>, vector<8x8xf32> -> vector<8x8xf32>
    %c0_77 = arith.constant 0 : index
    %c24_78 = arith.constant 24 : index
    %125 = vector.load %arg8[%c0_77, %c24_78] : memref<16x32xf32, #tpu.memory_space<vmem>>, vector<8x8xf32>
    tpu.vector_store %arg8[%c0_77, %c24_78], %124 {strides = array<i32>} : memref<16x32xf32, #tpu.memory_space<vmem>>, vector<8x8xf32>,
    %c32_79 = arith.constant 32 : index
    %c0_80 = arith.constant 0 : index
    %126 = vector.load %arg7[%c32_79, %c0_80] : memref<64x16xf32, #tpu.memory_space<vmem>>, vector<8x16xf32>
    %c0_81 = arith.constant 0 : index
    %c1_82 = arith.constant 1 : index
    %c0_83 = arith.constant 0 : index
    %c0_84 = arith.constant 0 : index
    %127 = vector.load %arg6[%c0_81, %c1_82, %c0_83, %c0_84] : memref<4x2x8x16xf32, #tpu.memory_space<vmem>>, vector<1x1x8x16xf32>
    %128 = vector.shape_cast %127 : vector<1x1x8x16xf32> to vector<8x16xf32>
    %129 = vector.shape_cast %126 : vector<8x16xf32> to vector<1x1x8x16xf32>
    tpu.vector_store %arg6[%c0_81, %c1_82, %c0_83, %c0_84], %129 {strides = array<i32>} : memref<4x2x8x16xf32, #tpu.memory_space<vmem>>, vector<1x1x8x16xf32>,
    %130 = vector.extract_strided_slice %37 {offsets = [16, 0], sizes = [16, 8], strides = [1, 1]} : vector<32x32xf32> to vector<16x8xf32>
    %cst_85 = arith.constant dense<0.000000e+00> : vector<8x8xf32>
    %131 = tpu.matmul %126, %130, %cst_85 {dimension_numbers = #tpu.dot_dimension_numbers<[1], [0], [0], [1], [0, 0, 1, 1], [], []>} : vector<8x16xf32>, vector<16x8xf32>, vector<8x8xf32> -> vector<8x8xf32>
    %c8_86 = arith.constant 8 : index
    %c0_87 = arith.constant 0 : index
    %132 = vector.load %arg8[%c8_86, %c0_87] : memref<16x32xf32, #tpu.memory_space<vmem>>, vector<8x8xf32>
    tpu.vector_store %arg8[%c8_86, %c0_87], %131 {strides = array<i32>} : memref<16x32xf32, #tpu.memory_space<vmem>>, vector<8x8xf32>,
    %c40_88 = arith.constant 40 : index
    %c0_89 = arith.constant 0 : index
    %133 = vector.load %arg7[%c40_88, %c0_89] : memref<64x16xf32, #tpu.memory_space<vmem>>, vector<8x16xf32>
    %c1_90 = arith.constant 1 : index
    %c1_91 = arith.constant 1 : index
    %c0_92 = arith.constant 0 : index
    %c0_93 = arith.constant 0 : index
    %134 = vector.load %arg6[%c1_90, %c1_91, %c0_92, %c0_93] : memref<4x2x8x16xf32, #tpu.memory_space<vmem>>, vector<1x1x8x16xf32>
    %135 = vector.shape_cast %134 : vector<1x1x8x16xf32> to vector<8x16xf32>
    %136 = vector.shape_cast %133 : vector<8x16xf32> to vector<1x1x8x16xf32>
    tpu.vector_store %arg6[%c1_90, %c1_91, %c0_92, %c0_93], %136 {strides = array<i32>} : memref<4x2x8x16xf32, #tpu.memory_space<vmem>>, vector<1x1x8x16xf32>,
    %137 = vector.extract_strided_slice %37 {offsets = [16, 8], sizes = [16, 8], strides = [1, 1]} : vector<32x32xf32> to vector<16x8xf32>
    %cst_94 = arith.constant dense<0.000000e+00> : vector<8x8xf32>
    %138 = tpu.matmul %133, %137, %cst_94 {dimension_numbers = #tpu.dot_dimension_numbers<[1], [0], [0], [1], [0, 0, 1, 1], [], []>} : vector<8x16xf32>, vector<16x8xf32>, vector<8x8xf32> -> vector<8x8xf32>
    %c8_95 = arith.constant 8 : index
    %c8_96 = arith.constant 8 : index
    %139 = vector.load %arg8[%c8_95, %c8_96] : memref<16x32xf32, #tpu.memory_space<vmem>>, vector<8x8xf32>
    tpu.vector_store %arg8[%c8_95, %c8_96], %138 {strides = array<i32>} : memref<16x32xf32, #tpu.memory_space<vmem>>, vector<8x8xf32>,
    %c48_97 = arith.constant 48 : index
    %c0_98 = arith.constant 0 : index
    %140 = vector.load %arg7[%c48_97, %c0_98] : memref<64x16xf32, #tpu.memory_space<vmem>>, vector<8x16xf32>
    %c2_99 = arith.constant 2 : index
    %c1_100 = arith.constant 1 : index
    %c0_101 = arith.constant 0 : index
    %c0_102 = arith.constant 0 : index
    %141 = vector.load %arg6[%c2_99, %c1_100, %c0_101, %c0_102] : memref<4x2x8x16xf32, #tpu.memory_space<vmem>>, vector<1x1x8x16xf32>
    %142 = vector.shape_cast %141 : vector<1x1x8x16xf32> to vector<8x16xf32>
    %143 = vector.shape_cast %140 : vector<8x16xf32> to vector<1x1x8x16xf32>
    tpu.vector_store %arg6[%c2_99, %c1_100, %c0_101, %c0_102], %143 {strides = array<i32>} : memref<4x2x8x16xf32, #tpu.memory_space<vmem>>, vector<1x1x8x16xf32>,
    %144 = vector.extract_strided_slice %37 {offsets = [16, 16], sizes = [16, 8], strides = [1, 1]} : vector<32x32xf32> to vector<16x8xf32>
    %cst_103 = arith.constant dense<0.000000e+00> : vector<8x8xf32>
    %145 = tpu.matmul %140, %144, %cst_103 {dimension_numbers = #tpu.dot_dimension_numbers<[1], [0], [0], [1], [0, 0, 1, 1], [], []>} : vector<8x16xf32>, vector<16x8xf32>, vector<8x8xf32> -> vector<8x8xf32>
    %c8_104 = arith.constant 8 : index
    %c16_105 = arith.constant 16 : index
    %146 = vector.load %arg8[%c8_104, %c16_105] : memref<16x32xf32, #tpu.memory_space<vmem>>, vector<8x8xf32>
    tpu.vector_store %arg8[%c8_104, %c16_105], %145 {strides = array<i32>} : memref<16x32xf32, #tpu.memory_space<vmem>>, vector<8x8xf32>,
    %c56_106 = arith.constant 56 : index
    %c0_107 = arith.constant 0 : index
    %147 = vector.load %arg7[%c56_106, %c0_107] : memref<64x16xf32, #tpu.memory_space<vmem>>, vector<8x16xf32>
    %c3_108 = arith.constant 3 : index
    %c1_109 = arith.constant 1 : index
    %c0_110 = arith.constant 0 : index
    %c0_111 = arith.constant 0 : index
    %148 = vector.load %arg6[%c3_108, %c1_109, %c0_110, %c0_111] : memref<4x2x8x16xf32, #tpu.memory_space<vmem>>, vector<1x1x8x16xf32>
    %149 = vector.shape_cast %148 : vector<1x1x8x16xf32> to vector<8x16xf32>
    %150 = vector.shape_cast %147 : vector<8x16xf32> to vector<1x1x8x16xf32>
    tpu.vector_store %arg6[%c3_108, %c1_109, %c0_110, %c0_111], %150 {strides = array<i32>} : memref<4x2x8x16xf32, #tpu.memory_space<vmem>>, vector<1x1x8x16xf32>,
    %151 = vector.extract_strided_slice %37 {offsets = [16, 24], sizes = [16, 8], strides = [1, 1]} : vector<32x32xf32> to vector<16x8xf32>
    %cst_112 = arith.constant dense<0.000000e+00> : vector<8x8xf32>
    %152 = tpu.matmul %147, %151, %cst_112 {dimension_numbers = #tpu.dot_dimension_numbers<[1], [0], [0], [1], [0, 0, 1, 1], [], []>} : vector<8x16xf32>, vector<16x8xf32>, vector<8x8xf32> -> vector<8x8xf32>
    %c8_113 = arith.constant 8 : index
    %c24_114 = arith.constant 24 : index
    %153 = vector.load %arg8[%c8_113, %c24_114] : memref<16x32xf32, #tpu.memory_space<vmem>>, vector<8x8xf32>
    tpu.vector_store %arg8[%c8_113, %c24_114], %152 {strides = array<i32>} : memref<16x32xf32, #tpu.memory_space<vmem>>, vector<8x8xf32>,
    %c0_115 = arith.constant 0 : index
    %c0_116 = arith.constant 0 : index
    %154 = vector.load %arg8[%c0_115, %c0_116] : memref<16x32xf32, #tpu.memory_space<vmem>>, vector<16x32xf32>
    %cst_117 = arith.constant dense<0.000000e+00> : vector<16x32xf32>
    %155 = tpu.matmul %154, %6, %cst_117 {dimension_numbers = #tpu.dot_dimension_numbers<[1], [0], [0], [1], [0, 0, 1, 1], [], []>} : vector<16x32xf32>, vector<32x32xf32>, vector<16x32xf32> -> vector<16x32xf32>
    %156 = vector.shape_cast %15 : vector<32xf32> to vector<1x32xf32>
    %157 = vector.broadcast %156 : vector<1x32xf32> to vector<16x32xf32>
    %158 = arith.addf %155, %157 : vector<16x32xf32>
    %159 = arith.addf %158, %1 : vector<16x32xf32>
    %cst_118 = arith.constant dense<0.000000e+00> : vector<16xf32>
    %160 = vector.multi_reduction <add>, %159, %cst_118 [1] : vector<16x32xf32> to vector<16xf32>
    %161 = vector.shape_cast %160 : vector<16xf32> to vector<16x1xf32>
    %cst_119 = arith.constant 3.200000e+01 : f32
    %162 = vector.broadcast %cst_119 : f32 to vector<16x1xf32>
    %163 = arith.divf %161, %162 : vector<16x1xf32>
    %164 = vector.broadcast %163 : vector<16x1xf32> to vector<16x32xf32>
    %165 = arith.subf %159, %164 : vector<16x32xf32>
    %166 = arith.mulf %165, %165 : vector<16x32xf32>
    %cst_120 = arith.constant dense<0.000000e+00> : vector<16xf32>
    %167 = vector.multi_reduction <add>, %166, %cst_120 [1] : vector<16x32xf32> to vector<16xf32>
    %168 = vector.shape_cast %167 : vector<16xf32> to vector<16x1xf32>
    %cst_121 = arith.constant 3.200000e+01 : f32
    %169 = vector.broadcast %cst_121 : f32 to vector<16x1xf32>
    %170 = arith.divf %168, %169 : vector<16x1xf32>
    %171 = vector.broadcast %163 : vector<16x1xf32> to vector<16x32xf32>
    %172 = arith.subf %159, %171 : vector<16x32xf32>
    %cst_122 = arith.constant 9.99999974E-6 : f32
    %173 = vector.broadcast %cst_122 : f32 to vector<16x1xf32>
    %174 = arith.addf %170, %173 : vector<16x1xf32>
    %175 = math.rsqrt %174 : vector<16x1xf32>
    %176 = vector.broadcast %175 : vector<16x1xf32> to vector<16x32xf32>
    %177 = arith.mulf %172, %176 : vector<16x32xf32>
    %178 = vector.shape_cast %17 : vector<32xf32> to vector<1x32xf32>
    %179 = vector.broadcast %178 : vector<1x32xf32> to vector<16x32xf32>
    %180 = arith.mulf %177, %179 : vector<16x32xf32>
    %181 = vector.shape_cast %19 : vector<32xf32> to vector<1x32xf32>
    %182 = vector.broadcast %181 : vector<1x32xf32> to vector<16x32xf32>
    %183 = arith.addf %180, %182 : vector<16x32xf32>
    %cst_123 = arith.constant dense<0.000000e+00> : vector<16x64xf32>
    %184 = tpu.matmul %183, %7, %cst_123 {dimension_numbers = #tpu.dot_dimension_numbers<[1], [0], [0], [1], [0, 0, 1, 1], [], []>} : vector<16x32xf32>, vector<32x64xf32>, vector<16x64xf32> -> vector<16x64xf32>
    %185 = vector.shape_cast %21 : vector<64xf32> to vector<1x64xf32>
    %186 = vector.broadcast %185 : vector<1x64xf32> to vector<16x64xf32>
    %187 = arith.addf %184, %186 : vector<16x64xf32>
    %cst_124 = arith.constant 0.000000e+00 : f32
    %188 = vector.broadcast %cst_124 : f32 to vector<16x64xf32>
    %189 = arith.maximumf %187, %188 : vector<16x64xf32>
    %cst_125 = arith.constant dense<0.000000e+00> : vector<16x32xf32>
    %190 = tpu.matmul %189, %8, %cst_125 {dimension_numbers = #tpu.dot_dimension_numbers<[1], [0], [0], [1], [0, 0, 1, 1], [], []>} : vector<16x64xf32>, vector<64x32xf32>, vector<16x32xf32> -> vector<16x32xf32>
    %191 = vector.shape_cast %23 : vector<32xf32> to vector<1x32xf32>
    %192 = vector.broadcast %191 : vector<1x32xf32> to vector<16x32xf32>
    %193 = arith.addf %190, %192 : vector<16x32xf32>
    %194 = arith.addf %193, %183 : vector<16x32xf32>
    %cst_126 = arith.constant dense<0.000000e+00> : vector<16xf32>
    %195 = vector.multi_reduction <add>, %194, %cst_126 [1] : vector<16x32xf32> to vector<16xf32>
    %196 = vector.shape_cast %195 : vector<16xf32> to vector<16x1xf32>
    %cst_127 = arith.constant 3.200000e+01 : f32
    %197 = vector.broadcast %cst_127 : f32 to vector<16x1xf32>
    %198 = arith.divf %196, %197 : vector<16x1xf32>
    %199 = vector.broadcast %198 : vector<16x1xf32> to vector<16x32xf32>
    %200 = arith.subf %194, %199 : vector<16x32xf32>
    %201 = arith.mulf %200, %200 : vector<16x32xf32>
    %cst_128 = arith.constant dense<0.000000e+00> : vector<16xf32>
    %202 = vector.multi_reduction <add>, %201, %cst_128 [1] : vector<16x32xf32> to vector<16xf32>
    %203 = vector.shape_cast %202 : vector<16xf32> to vector<16x1xf32>
    %cst_129 = arith.constant 3.200000e+01 : f32
    %204 = vector.broadcast %cst_129 : f32 to vector<16x1xf32>
    %205 = arith.divf %203, %204 : vector<16x1xf32>
    %206 = vector.broadcast %198 : vector<16x1xf32> to vector<16x32xf32>
    %207 = arith.subf %194, %206 : vector<16x32xf32>
    %cst_130 = arith.constant 9.99999974E-6 : f32
    %208 = vector.broadcast %cst_130 : f32 to vector<16x1xf32>
    %209 = arith.addf %205, %208 : vector<16x1xf32>
    %210 = math.rsqrt %209 : vector<16x1xf32>
    %211 = vector.broadcast %210 : vector<16x1xf32> to vector<16x32xf32>
    %212 = arith.mulf %207, %211 : vector<16x32xf32>
    %213 = vector.shape_cast %25 : vector<32xf32> to vector<1x32xf32>
    %214 = vector.broadcast %213 : vector<1x32xf32> to vector<16x32xf32>
    %215 = arith.mulf %212, %214 : vector<16x32xf32>
    %216 = vector.shape_cast %27 : vector<32xf32> to vector<1x32xf32>
    %217 = vector.broadcast %216 : vector<1x32xf32> to vector<16x32xf32>
    %218 = arith.addf %215, %217 : vector<16x32xf32>
    %219 = vector.shape_cast %218 : vector<16x32xf32> to vector<2x8x32xf32>
    %c0_131 = arith.constant 0 : index
    %c0_132 = arith.constant 0 : index
    %c0_133 = arith.constant 0 : index
    %220 = vector.load %arg5[%c0_131, %c0_132, %c0_133] : memref<2x8x32xf32, #tpu.memory_space<vmem>>, vector<2x8x32xf32>
    tpu.vector_store %arg5[%c0_131, %c0_132, %c0_133], %219 {strides = array<i32>} : memref<2x8x32xf32, #tpu.memory_space<vmem>>, vector<2x8x32xf32>,
    return
  }
  func.func @transform_0(%arg0: i32) -> (i32, i32, i32) {
    %c0_i32 = arith.constant 0 : i32
    %c0_i32_0 = arith.constant 0 : i32
    %c0_i32_1 = arith.constant 0 : i32
    return %arg0, %c0_i32, %c0_i32_0 : i32, i32, i32
  }
  func.func @transform_1(%arg0: i32) -> (i32, i32, i32) {
    %c0_i32 = arith.constant 0 : i32
    %c0_i32_0 = arith.constant 0 : i32
    %c0_i32_1 = arith.constant 0 : i32
    return %arg0, %c0_i32, %c0_i32_0 : i32, i32, i32
  }
  func.func @transform_2(%arg0: i32) -> (i32, i32) {
    %c0_i32 = arith.constant 0 : i32
    %c0_i32_0 = arith.constant 0 : i32
    %c0_i32_1 = arith.constant 0 : i32
    return %c0_i32, %c0_i32_0 : i32, i32
  }
  func.func @transform_3(%arg0: i32) -> (i32, i32) {
    %c0_i32 = arith.constant 0 : i32
    %c0_i32_0 = arith.constant 0 : i32
    %c0_i32_1 = arith.constant 0 : i32
    return %c0_i32, %c0_i32_0 : i32, i32
  }
  func.func @transform_4(%arg0: i32) -> (i32, i32, i32) {
    %c0_i32 = arith.constant 0 : i32
    %c0_i32_0 = arith.constant 0 : i32
    %c0_i32_1 = arith.constant 0 : i32
    return %arg0, %c0_i32, %c0_i32_0 : i32, i32, i32
  }
  func.func @transform_5(%arg0: i32) -> (i32, i32, i32, i32) {
    %c0_i32 = arith.constant 0 : i32
    %c0_i32_0 = arith.constant 0 : i32
    %c0_i32_1 = arith.constant 0 : i32
    %c0_i32_2 = arith.constant 0 : i32
    return %c0_i32, %arg0, %c0_i32_0, %c0_i32_1 : i32, i32, i32, i32
  }
}

</mosaic_0001>

<llo_original>
// kernel: tpu_custom_call.1
$region0: #{tpu_custom_call.1}
  #allocation0 [shape = 'u32[]', space=smem, size = 0x4, offset = 0x4, fixed_abs, tag = 'smem constant byte address 0x4 - core index']
  #allocation1 [shape = 'u32[144,128]{1,0:T(1,128)}', space=vmem, size = 0x12000, scoped, tag = 'internal scratch']
  #allocation2 [shape = 'f32[64,16]{1,0:T(8,128)}', space=vmem, size = 0x8000, scoped, tag = 'scratch operand']
  #allocation3 [shape = 'f32[16,32]{1,0:T(8,128)}', space=vmem, size = 0x2000, scoped, tag = 'scratch operand']
  %s0 = inlined_call_operand.hbm [shape: f32[2,8,32], index: 0, kind: input, shape index: {}]
  %s1 = inlined_call_operand.hbm [shape: f32[2,16,32], index: 1, kind: input, shape index: {}]
  %s2 = inlined_call_operand.hbm [shape: f32[192,128], index: 2, kind: input, shape index: {}]
  %s3 = inlined_call_operand.hbm [shape: f32[9,128], index: 3, kind: input, shape index: {}]
  %s4 = inlined_call_operand.hbm [shape: f32[2,8,32], index: 4, kind: output, shape index: {0}]
  %s5 = inlined_call_operand.hbm [shape: f32[4,2,8,16], index: 5, kind: output, shape index: {1}]
  %6 = xla_tuple %s4, %s5
  %s7 = sld [smem:[#allocation0]]
  $region50: #{tpu_custom_call.1} parent=0
    _
  %s9 = ssub.s32 1, %s7
  %s10 = scalar_select 0, %s9, %s7
  $region1: #{tpu_custom_call.1} parent=0
    #allocation4 [shape = 'u8[8192]{0}', space=vmem, size = 0x2000, scoped, tag = 'input window, operand 0, single buffered']
    #allocation5 [shape = 's32[1]{0}', space=sflag, size = 0x4, scoped, tag = 'scoped memory for tpu_custom_call.1']
    #allocation6 [shape = 's32[1]{0}', space=sflag, size = 0x4, scoped, tag = 'scoped memory for tpu_custom_call.1']
    #allocation7 [shape = 'u8[16384]{0}', space=vmem, size = 0x4000, scoped, tag = 'input window, operand 1, single buffered']
    #allocation8 [shape = 's32[1]{0}', space=sflag, size = 0x4, scoped, tag = 'scoped memory for tpu_custom_call.1']
    #allocation9 [shape = 'u8[98304]{0}', space=vmem, size = 0x18000, scoped, tag = 'input window, operand 2, single buffered']
    #allocation10 [shape = 'u8[8192]{0}', space=vmem, size = 0x2000, scoped, tag = 'input window, operand 3, single buffered']
    #allocation11 [shape = 's32[1]{0}', space=sflag, size = 0x4, scoped, tag = 'scoped memory for tpu_custom_call.1']
    #allocation12 [shape = 'u8[8192]{0}', space=vmem, size = 0x2000, scoped, tag = 'output window, operand 0, single buffered']
    #allocation13 [shape = 'u8[32768]{0}', space=vmem, size = 0x8000, scoped, tag = 'output window, operand 1, single buffered']
    #allocation14 [shape = 's32[1]{0}', space=sflag, size = 0x4, scoped, tag = 'scoped memory for tpu_custom_call.1']
    %11 = vsyncpa [#allocation5], 0
    %12 = vsyncpa [#allocation8], 0
    %13 = vsyncpa [#allocation11], 0
    %14 = vsyncpa [#allocation6], 0
    %15 = vsyncpa [#allocation14], 0
    // Predicated region
    $region2: #{tpu_custom_call.1} parent=1 // pred_check
      _
    $region3: #{tpu_custom_call.1} parent=1 // pred_check_branch
      %17 = sbr.rel (0) target = $region5
    $region4: #{tpu_custom_call.1} parent=1 // pred_region
      %s19 = ssub.s32 256, 256
      %20 = vsyncadd [#allocation5], %s19
      %s21 = sshll.u32 [#allocation4], 4
      %s22 = int_to_ptr.vmem [resolvable:$true] %s21
      %27 = dma.hbm_to_vmem [thread:$0]  %s0, 256, %s22, [#allocation5], 128, 128, 8
    $region5: #{tpu_custom_call.1} parent=1 // pred_fallthru
      _
    // Predicated region
    $region6: #{tpu_custom_call.1} parent=1 // pred_check
      _
    $region7: #{tpu_custom_call.1} parent=1 // pred_check_branch
      %29 = sbr.rel (0) target = $region9
    $region8: #{tpu_custom_call.1} parent=1 // pred_region
      %s31 = ssub.s32 512, 512
      %32 = vsyncadd [#allocation8], %s31
      %s33 = sshll.u32 [#allocation7], 4
      %s34 = int_to_ptr.vmem [resolvable:$true] %s33
      %39 = dma.hbm_to_vmem [thread:$0]  %s1, 512, %s34, [#allocation8], 128, 128, 8
    $region9: #{tpu_custom_call.1} parent=1 // pred_fallthru
      _
    // Predicated region
    $region10: #{tpu_custom_call.1} parent=1 // pred_check
      _
    $region11: #{tpu_custom_call.1} parent=1 // pred_check_branch
      %41 = sbr.rel (0) target = $region13
    $region12: #{tpu_custom_call.1} parent=1 // pred_region
      %s43 = ssub.s32 3072, 3072
      %44 = vsyncadd [#allocation8], %s43
      %s45 = sshll.u32 [#allocation9], 4
      %s46 = int_to_ptr.vmem [resolvable:$true] %s45
      %51 = dma.hbm_to_vmem [thread:$0]  %s2, 3072, %s46, [#allocation8], 128, 128, 8
    $region13: #{tpu_custom_call.1} parent=1 // pred_fallthru
      _
    // Predicated region
    $region14: #{tpu_custom_call.1} parent=1 // pred_check
      _
    $region15: #{tpu_custom_call.1} parent=1 // pred_check_branch
      %53 = sbr.rel (0) target = $region17
    $region16: #{tpu_custom_call.1} parent=1 // pred_region
      %s55 = ssub.s32 256, 256
      %56 = vsyncadd [#allocation11], %s55
      %s57 = sshll.u32 [#allocation10], 4
      %s58 = int_to_ptr.vmem [resolvable:$true] %s57
      %63 = dma.hbm_to_vmem [thread:$0]  %s3, 256, %s58, [#allocation11], 128, 128, 8
    $region17: #{tpu_custom_call.1} parent=1 // pred_fallthru
      _
    // Predicated region
    $region18: #{tpu_custom_call.1} parent=1 // pred_check
      _
    $region19: #{tpu_custom_call.1} parent=1 // pred_check_branch
      %65 = sbr.rel (0) target = $region21
    $region20: #{tpu_custom_call.1} parent=1 // pred_region
      %66 = dma.done [#allocation5], 256
    $region21: #{tpu_custom_call.1} parent=1 // pred_fallthru
      _
    // Predicated region
    $region22: #{tpu_custom_call.1} parent=1 // pred_check
      _
    $region23: #{tpu_custom_call.1} parent=1 // pred_check_branch
      %68 = sbr.rel (0) target = $region25
    $region24: #{tpu_custom_call.1} parent=1 // pred_region
      %69 = dma.done [#allocation8], 512
    $region25: #{tpu_custom_call.1} parent=1 // pred_fallthru
      _
    // Predicated region
    $region26: #{tpu_custom_call.1} parent=1 // pred_check
      _
    $region27: #{tpu_custom_call.1} parent=1 // pred_check_branch
      %71 = sbr.rel (0) target = $region29
    $region28: #{tpu_custom_call.1} parent=1 // pred_region
      %72 = dma.done [#allocation8], 3072
    $region29: #{tpu_custom_call.1} parent=1 // pred_fallthru
      _
    // Predicated region
    $region30: #{tpu_custom_call.1} parent=1 // pred_check
      _
    $region31: #{tpu_custom_call.1} parent=1 // pred_check_branch
      %74 = sbr.rel (0) target = $region33
    $region32: #{tpu_custom_call.1} parent=1 // pred_region
      %75 = dma.done [#allocation11], 256
    $region33: #{tpu_custom_call.1} parent=1 // pred_fallthru
      _
    %v76 = vld [vmem:[#allocation4] sm:$0xff]
    %v77 = vld [vmem:[#allocation4 + $0x8] sm:$0xff]
    %v78 = vld [vmem:[#allocation7] sm:$0xff]
    %v79 = vld [vmem:[#allocation7 + $0x8] sm:$0xff]
    %v80 = vld [vmem:[#allocation7 + $0x10] sm:$0xff]
    %v81 = vld [vmem:[#allocation7 + $0x18] sm:$0xff]
    %v82 = vld [vmem:[#allocation9] sm:$0xff]
    %v83 = vld [vmem:[#allocation9 + $0x8] sm:$0xff]
    %v84 = vld [vmem:[#allocation9 + $0x10] sm:$0xff]
    %v85 = vld [vmem:[#allocation9 + $0x18] sm:$0xff]
    %v86 = vld [vmem:[#allocation9 + $0x20] sm:$0xff]
    %v87 = vld [vmem:[#allocation9 + $0x28] sm:$0xff]
    %v88 = vld [vmem:[#allocation9 + $0x30] sm:$0xff]
    %v89 = vld [vmem:[#allocation9 + $0x38] sm:$0xff]
    %v90 = vld [vmem:[#allocation9 + $0x40] sm:$0xff]
    %v91 = vld [vmem:[#allocation9 + $0x48] sm:$0xff]
    %v92 = vld [vmem:[#allocation9 + $0x50] sm:$0xff]
    %v93 = vld [vmem:[#allocation9 + $0x58] sm:$0xff]
    %v94 = vld [vmem:[#allocation9 + $0x60] sm:$0xff]
    %v95 = vld [vmem:[#allocation9 + $0x68] sm:$0xff]
    %v96 = vld [vmem:[#allocation9 + $0x70] sm:$0xff]
    %v97 = vld [vmem:[#allocation9 + $0x78] sm:$0xff]
    %v98 = vld [vmem:[#allocation9 + $0x80] sm:$0xff]
    %v99 = vld [vmem:[#allocation9 + $0x88] sm:$0xff]
    %v100 = vld [vmem:[#allocation9 + $0x90] sm:$0xff]
    %v101 = vld [vmem:[#allocation9 + $0x98] sm:$0xff]
    %v102 = vld [vmem:[#allocation9 + $0xa0] sm:$0xff]
    %v103 = vld [vmem:[#allocation9 + $0xa8] sm:$0xff]
    %v104 = vld [vmem:[#allocation9 + $0xb0] sm:$0xff]
    %v105 = vld [vmem:[#allocation9 + $0xb8] sm:$0xff]
    %v106 = vld [vmem:[#allocation10] sm:$0xff]
    %v107 = vld [vmem:[#allocation10 + $0x8] sm:$0x1]
    %v108 = vlaneseq
    %v109 = vshrl.u32 %v108, 7
    %v110 = vsub.s32 0, %v109
    %v111 = vrot.slane %v106, %v110
    %vm112 = vcmask 261120
    %v114 = vsel %vm112, %v76, 0
    %v117 = vsel %vm112, %v77, 0
    %119 = vmatprep.subr.mxu0 0.0
    %120 = vmatpush1.msra.mxu0 %v82
    %121 = vmatprep.subr.mxu0 0.0
    %122 = vmatpush1.msra.mxu0 %v83
    %123 = vmatprep.subr.mxu0 0.0
    %124 = vmatpush1.msra.mxu0 %v84
    %125 = vmatprep.subr.mxu0 0.0
    %126 = vmatpush1.msra.mxu0 %v85
    %127 = vmatprep.subr.mxu0 0.0
    %128 = vmatpush1.msra.mxu0 0.0
    %129 = vmatprep.subr.mxu0 0.0
    %130 = vmatpush1.msra.mxu0 0.0
    %131 = vmatprep.subr.mxu0 0.0
    %132 = vmatpush1.msra.mxu0 0.0
    %133 = vmatprep.subr.mxu0 0.0
    %134 = vmatpush1.msra.mxu0 0.0
    %135 = vmatprep.subr.mxu0 0.0
    %136 = vmatpush1.msra.mxu0 0.0
    %137 = vmatprep.subr.mxu0 0.0
    %138 = vmatpush1.msra.mxu0 0.0
    %139 = vmatprep.subr.mxu0 0.0
    %140 = vmatpush1.msra.mxu0 0.0
    %141 = vmatprep.subr.mxu0 0.0
    %142 = vmatpush1.msra.mxu0 0.0
    %143 = vmatprep.subr.mxu0 0.0
    %144 = vmatpush1.msra.mxu0 0.0
    %145 = vmatprep.subr.mxu0 0.0
    %146 = vmatpush1.msra.mxu0 0.0
    %147 = vmatprep.subr.mxu0 0.0
    %148 = vmatpush1.msra.mxu0 0.0
    %149 = vmatprep.subr.mxu0 0.0
    %150 = vmatpush1.msra.mxu0 0.0
    %151 = vmatprep.subr.mxu0 0.0
    %152 = vmatpush1.msra.mxu0 0.0
    %153 = vmatprep.subr.mxu0 0.0
    %154 = vmatpush1.msra.mxu0 0.0
    %155 = vmatprep.subr.mxu0 0.0
    %156 = vmatpush1.msra.mxu0 0.0
    %157 = vmatprep.subr.mxu0 0.0
    %158 = vmatpush1.msra.mxu0 0.0
    %159 = vmatprep.subr.mxu0 0.0
    %160 = vmatpush1.msra.mxu0 0.0
    %161 = vmatprep.subr.mxu0 0.0
    %162 = vmatpush1.msra.mxu0 0.0
    %163 = vmatprep.subr.mxu0 0.0
    %164 = vmatpush1.msra.mxu0 0.0
    %165 = vmatprep.subr.mxu0 0.0
    %166 = vmatpush1.msra.mxu0 0.0
    %167 = vmatprep.subr.mxu0 0.0
    %168 = vmatpush1.msra.mxu0 0.0
    %169 = vmatprep.subr.mxu0 0.0
    %170 = vmatpush1.msra.mxu0 0.0
    %171 = vmatprep.subr.mxu0 0.0
    %172 = vmatpush1.msra.mxu0 0.0
    %173 = vmatprep.subr.mxu0 0.0
    %174 = vmatpush1.msra.mxu0 0.0
    %175 = vmatprep.subr.mxu0 0.0
    %176 = vmatpush1.msra.mxu0 0.0
    %177 = vmatprep.subr.mxu0 0.0
    %178 = vmatpush1.msra.mxu0 0.0
    %179 = vmatprep.subr.mxu0 0.0
    %180 = vmatpush1.msra.mxu0 0.0
    %181 = vmatprep.subr.mxu0 0.0
    %182 = vmatpush1.msra.mxu0 0.0
    %183 = vmatprep.mubr.f32.mxu0 0.0
    %184 = vmatmul.mubr.f32.gmra.mrb[0].mxu0 %v114
    %v185 = vpop.f32.mrb[0].mxu0
    %v186 = vadd.f32 %v111, %v185
    %v187 = vpop.f32.mrb[0].mxu0
    %188 = vmatprep.mubr.f32.mxu0 0.0
    %189 = vmatmul.mubr.f32.gmra.mrb[0].mxu0 %v117
    %v190 = vpop.f32.mrb[0].mxu0
    %v191 = vadd.f32 %v111, %v190
    %v192 = vpop.f32.mrb[0].mxu0
    %193 = vdwg.mxu0
    %v194 = vlaneseq
    %v195 = vshrl.u32 %v194, 7
    %v196 = vsub.s32 1, %v195
    %v197 = vrot.slane %v106, %v196
    %v199 = vsel %vm112, %v78, 0
    %v202 = vsel %vm112, %v79, 0
    %v205 = vsel %vm112, %v80, 0
    %v208 = vsel %vm112, %v81, 0
    %210 = vmatprep.subr.mxu0 0.0
    %211 = vmatpush1.msra.mxu0 %v86
    %212 = vmatprep.subr.mxu0 0.0
    %213 = vmatpush1.msra.mxu0 %v87
    %214 = vmatprep.subr.mxu0 0.0
    %215 = vmatpush1.msra.mxu0 %v88
    %216 = vmatprep.subr.mxu0 0.0
    %217 = vmatpush1.msra.mxu0 %v89
    %218 = vmatprep.subr.mxu0 0.0
    %219 = vmatpush1.msra.mxu0 0.0
    %220 = vmatprep.subr.mxu0 0.0
    %221 = vmatpush1.msra.mxu0 0.0
    %222 = vmatprep.subr.mxu0 0.0
    %223 = vmatpush1.msra.mxu0 0.0
    %224 = vmatprep.subr.mxu0 0.0
    %225 = vmatpush1.msra.mxu0 0.0
    %226 = vmatprep.subr.mxu0 0.0
    %227 = vmatpush1.msra.mxu0 0.0
    %228 = vmatprep.subr.mxu0 0.0
    %229 = vmatpush1.msra.mxu0 0.0
    %230 = vmatprep.subr.mxu0 0.0
    %231 = vmatpush1.msra.mxu0 0.0
    %232 = vmatprep.subr.mxu0 0.0
    %233 = vmatpush1.msra.mxu0 0.0
    %234 = vmatprep.subr.mxu0 0.0
    %235 = vmatpush1.msra.mxu0 0.0
    %236 = vmatprep.subr.mxu0 0.0
    %237 = vmatpush1.msra.mxu0 0.0
    %238 = vmatprep.subr.mxu0 0.0
    %239 = vmatpush1.msra.mxu0 0.0
    %240 = vmatprep.subr.mxu0 0.0
    %241 = vmatpush1.msra.mxu0 0.0
    %242 = vmatprep.subr.mxu0 0.0
    %243 = vmatpush1.msra.mxu0 0.0
    %244 = vmatprep.subr.mxu0 0.0
    %245 = vmatpush1.msra.mxu0 0.0
    %246 = vmatprep.subr.mxu0 0.0
    %247 = vmatpush1.msra.mxu0 0.0
    %248 = vmatprep.subr.mxu0 0.0
    %249 = vmatpush1.msra.mxu0 0.0
    %250 = vmatprep.subr.mxu0 0.0
    %251 = vmatpush1.msra.mxu0 0.0
    %252 = vmatprep.subr.mxu0 0.0
    %253 = vmatpush1.msra.mxu0 0.0
    %254 = vmatprep.subr.mxu0 0.0
    %255 = vmatpush1.msra.mxu0 0.0
    %256 = vmatprep.subr.mxu0 0.0
    %257 = vmatpush1.msra.mxu0 0.0
    %258 = vmatprep.subr.mxu0 0.0
    %259 = vmatpush1.msra.mxu0 0.0
    %260 = vmatprep.subr.mxu0 0.0
    %261 = vmatpush1.msra.mxu0 0.0
    %262 = vmatprep.subr.mxu0 0.0
    %263 = vmatpush1.msra.mxu0 0.0
    %264 = vmatprep.subr.mxu0 0.0
    %265 = vmatpush1.msra.mxu0 0.0
    %266 = vmatprep.subr.mxu0 0.0
    %267 = vmatpush1.msra.mxu0 0.0
    %268 = vmatprep.subr.mxu0 0.0
    %269 = vmatpush1.msra.mxu0 0.0
    %270 = vmatprep.subr.mxu0 0.0
    %271 = vmatpush1.msra.mxu0 0.0
    %272 = vmatprep.subr.mxu0 0.0
    %273 = vmatpush1.msra.mxu0 0.0
    %274 = vmatprep.mubr.f32.mxu0 0.0
    %275 = vmatmul.mubr.f32.gmra.mrb[0].mxu0 %v199
    %v276 = vpop.f32.mrb[0].mxu0
    %v277 = vadd.f32 %v197, %v276
    %v278 = vpop.f32.mrb[0].mxu0
    %279 = vmatprep.mubr.f32.mxu0 0.0
    %280 = vmatmul.mubr.f32.gmra.mrb[0].mxu0 %v202
    %v281 = vpop.f32.mrb[0].mxu0
    %v282 = vadd.f32 %v197, %v281
    %v283 = vpop.f32.mrb[0].mxu0
    %284 = vmatprep.mubr.f32.mxu0 0.0
    %285 = vmatmul.mubr.f32.gmra.mrb[0].mxu0 %v205
    %v286 = vpop.f32.mrb[0].mxu0
    %v287 = vadd.f32 %v197, %v286
    %v288 = vpop.f32.mrb[0].mxu0
    %289 = vmatprep.mubr.f32.mxu0 0.0
    %290 = vmatmul.mubr.f32.gmra.mrb[0].mxu0 %v208
    %v291 = vpop.f32.mrb[0].mxu0
    %v292 = vadd.f32 %v197, %v291
    %v293 = vpop.f32.mrb[0].mxu0
    %294 = vdwg.mxu0
    %vm295 = vcmask 64512
    %v297 = vsel %vm295, %v186, 0
    %v300 = vsel %vm295, %v277, 0
    %v303 = vsel %vm295, %v282, 0
    %305 = vmatprep.subr.mxu0 0.0
    %306 = vmatpush1.xpose.msra.mxu0 %v300
    %307 = vmatprep.subr.mxu0 0.0
    %308 = vmatpush1.xpose.msra.mxu0 %v303
    %309 = vmatprep.subr.mxu0 0.0
    %310 = vmatpush1.xpose.msra.mxu0 0.0
    %311 = vmatprep.subr.mxu0 0.0
    %312 = vmatpush1.xpose.msra.mxu0 0.0
    %313 = vmatprep.subr.mxu0 0.0
    %314 = vmatpush1.xpose.msra.mxu0 0.0
    %315 = vmatprep.subr.mxu0 0.0
    %316 = vmatpush1.xpose.msra.mxu0 0.0
    %317 = vmatprep.subr.mxu0 0.0
    %318 = vmatpush1.xpose.msra.mxu0 0.0
    %319 = vmatprep.subr.mxu0 0.0
    %320 = vmatpush1.xpose.msra.mxu0 0.0
    %321 = vmatprep.subr.mxu0 0.0
    %322 = vmatpush1.xpose.msra.mxu0 0.0
    %323 = vmatprep.subr.mxu0 0.0
    %324 = vmatpush1.xpose.msra.mxu0 0.0
    %325 = vmatprep.subr.mxu0 0.0
    %326 = vmatpush1.xpose.msra.mxu0 0.0
    %327 = vmatprep.subr.mxu0 0.0
    %328 = vmatpush1.xpose.msra.mxu0 0.0
    %329 = vmatprep.subr.mxu0 0.0
    %330 = vmatpush1.xpose.msra.mxu0 0.0
    %331 = vmatprep.subr.mxu0 0.0
    %332 = vmatpush1.xpose.msra.mxu0 0.0
    %333 = vmatprep.subr.mxu0 0.0
    %334 = vmatpush1.xpose.msra.mxu0 0.0
    %335 = vmatprep.subr.mxu0 0.0
    %336 = vmatpush1.xpose.msra.mxu0 0.0
    %337 = vmatprep.subr.mxu0 0.0
    %338 = vmatpush1.xpose.msra.mxu0 0.0
    %339 = vmatprep.subr.mxu0 0.0
    %340 = vmatpush1.xpose.msra.mxu0 0.0
    %341 = vmatprep.subr.mxu0 0.0
    %342 = vmatpush1.xpose.msra.mxu0 0.0
    %343 = vmatprep.subr.mxu0 0.0
    %344 = vmatpush1.xpose.msra.mxu0 0.0
    %345 = vmatprep.subr.mxu0 0.0
    %346 = vmatpush1.xpose.msra.mxu0 0.0
    %347 = vmatprep.subr.mxu0 0.0
    %348 = vmatpush1.xpose.msra.mxu0 0.0
    %349 = vmatprep.subr.mxu0 0.0
    %350 = vmatpush1.xpose.msra.mxu0 0.0
    %351 = vmatprep.subr.mxu0 0.0
    %352 = vmatpush1.xpose.msra.mxu0 0.0
    %353 = vmatprep.subr.mxu0 0.0
    %354 = vmatpush1.xpose.msra.mxu0 0.0
    %355 = vmatprep.subr.mxu0 0.0
    %356 = vmatpush1.xpose.msra.mxu0 0.0
    %357 = vmatprep.subr.mxu0 0.0
    %358 = vmatpush1.xpose.msra.mxu0 0.0
    %359 = vmatprep.subr.mxu0 0.0
    %360 = vmatpush1.xpose.msra.mxu0 0.0
    %361 = vmatprep.subr.mxu0 0.0
    %362 = vmatpush1.xpose.msra.mxu0 0.0
    %363 = vmatprep.subr.mxu0 0.0
    %364 = vmatpush1.xpose.msra.mxu0 0.0
    %365 = vmatprep.subr.mxu0 0.0
    %366 = vmatpush1.xpose.msra.mxu0 0.0
    %367 = vmatprep.subr.mxu0 0.0
    %368 = vmatpush1.xpose.msra.mxu0 0.0
    %369 = vmatprep.mubr.f32.mxu0 0.0
    %370 = vmatmul.mubr.f32.gmra.mrb[0].mxu0 %v297
    %v371 = vpop.f32.mrb[0].mxu0
    %v372 = vadd.f32 0.0, %v371
    %v373 = vpop.f32.mrb[0].mxu0
    %374 = vdwg.mxu0
    %v375 = vmul.f32 %v372, 0.35355338
    %vm376 = vcmask 130048
    %377 = vst.msk [vmem:[#allocation2] sm:$0xff] %vm376, %v375
    %378 = vrot.lane.b32.xlu0 %v186, 120
    %v379 = vpop.permute.xlu0 %378
    %380 = vrot.lane.b32.xlu0 %v277, 120
    %v381 = vpop.permute.xlu0 %380
    %382 = vrot.lane.b32.xlu0 %v282, 120
    %v383 = vpop.permute.xlu0 %382
    %v384 = vsel %vm295, %v379, 0
    %v386 = vsel %vm295, %v381, 0
    %v388 = vsel %vm295, %v383, 0
    %390 = vmatprep.subr.mxu0 0.0
    %391 = vmatpush1.xpose.msra.mxu0 %v386
    %392 = vmatprep.subr.mxu0 0.0
    %393 = vmatpush1.xpose.msra.mxu0 %v388
    %394 = vmatprep.subr.mxu0 0.0
    %395 = vmatpush1.xpose.msra.mxu0 0.0
    %396 = vmatprep.subr.mxu0 0.0
    %397 = vmatpush1.xpose.msra.mxu0 0.0
    %398 = vmatprep.subr.mxu0 0.0
    %399 = vmatpush1.xpose.msra.mxu0 0.0
    %400 = vmatprep.subr.mxu0 0.0
    %401 = vmatpush1.xpose.msra.mxu0 0.0
    %402 = vmatprep.subr.mxu0 0.0
    %403 = vmatpush1.xpose.msra.mxu0 0.0
    %404 = vmatprep.subr.mxu0 0.0
    %405 = vmatpush1.xpose.msra.mxu0 0.0
    %406 = vmatprep.subr.mxu0 0.0
    %407 = vmatpush1.xpose.msra.mxu0 0.0
    %408 = vmatprep.subr.mxu0 0.0
    %409 = vmatpush1.xpose.msra.mxu0 0.0
    %410 = vmatprep.subr.mxu0 0.0
    %411 = vmatpush1.xpose.msra.mxu0 0.0
    %412 = vmatprep.subr.mxu0 0.0
    %413 = vmatpush1.xpose.msra.mxu0 0.0
    %414 = vmatprep.subr.mxu0 0.0
    %415 = vmatpush1.xpose.msra.mxu0 0.0
    %416 = vmatprep.subr.mxu0 0.0
    %417 = vmatpush1.xpose.msra.mxu0 0.0
    %418 = vmatprep.subr.mxu0 0.0
    %419 = vmatpush1.xpose.msra.mxu0 0.0
    %420 = vmatprep.subr.mxu0 0.0
    %421 = vmatpush1.xpose.msra.mxu0 0.0
    %422 = vmatprep.subr.mxu0 0.0
    %423 = vmatpush1.xpose.msra.mxu0 0.0
    %424 = vmatprep.subr.mxu0 0.0
    %425 = vmatpush1.xpose.msra.mxu0 0.0
    %426 = vmatprep.subr.mxu0 0.0
    %427 = vmatpush1.xpose.msra.mxu0 0.0
    %428 = vmatprep.subr.mxu0 0.0
    %429 = vmatpush1.xpose.msra.mxu0 0.0
    %430 = vmatprep.subr.mxu0 0.0
    %431 = vmatpush1.xpose.msra.mxu0 0.0
    %432 = vmatprep.subr.mxu0 0.0
    %433 = vmatpush1.xpose.msra.mxu0 0.0
    %434 = vmatprep.subr.mxu0 0.0
    %435 = vmatpush1.xpose.msra.mxu0 0.0
    %436 = vmatprep.subr.mxu0 0.0
    %437 = vmatpush1.xpose.msra.mxu0 0.0
    %438 = vmatprep.subr.mxu0 0.0
    %439 = vmatpush1.xpose.msra.mxu0 0.0
    %440 = vmatprep.subr.mxu0 0.0
    %441 = vmatpush1.xpose.msra.mxu0 0.0
    %442 = vmatprep.subr.mxu0 0.0
    %443 = vmatpush1.xpose.msra.mxu0 0.0
    %444 = vmatprep.subr.mxu0 0.0
    %445 = vmatpush1.xpose.msra.mxu0 0.0
    %446 = vmatprep.subr.mxu0 0.0
    %447 = vmatpush1.xpose.msra.mxu0 0.0
    %448 = vmatprep.subr.mxu0 0.0
    %449 = vmatpush1.xpose.msra.mxu0 0.0
    %450 = vmatprep.subr.mxu0 0.0
    %451 = vmatpush1.xpose.msra.mxu0 0.0
    %452 = vmatprep.subr.mxu0 0.0
    %453 = vmatpush1.xpose.msra.mxu0 0.0
    %454 = vmatprep.mubr.f32.mxu0 0.0
    %455 = vmatmul.mubr.f32.gmra.mrb[0].mxu0 %v384
    %v456 = vpop.f32.mrb[0].mxu0
    %v457 = vadd.f32 0.0, %v456
    %v458 = vpop.f32.mrb[0].mxu0
    %459 = vdwg.mxu0
    %v460 = vmul.f32 %v457, 0.35355338
    %461 = vst.msk [vmem:[#allocation2 + $0x8] sm:$0xff] %vm376, %v460
    %462 = vrot.lane.b32.xlu0 %v186, 112
    %v463 = vpop.permute.xlu0 %462
    %464 = vrot.lane.b32.xlu0 %v277, 112
    %v465 = vpop.permute.xlu0 %464
    %466 = vrot.lane.b32.xlu0 %v282, 112
    %v467 = vpop.permute.xlu0 %466
    %v468 = vsel %vm295, %v463, 0
    %v470 = vsel %vm295, %v465, 0
    %v472 = vsel %vm295, %v467, 0
    %474 = vmatprep.subr.mxu0 0.0
    %475 = vmatpush1.xpose.msra.mxu0 %v470
    %476 = vmatprep.subr.mxu0 0.0
    %477 = vmatpush1.xpose.msra.mxu0 %v472
    %478 = vmatprep.subr.mxu0 0.0
    %479 = vmatpush1.xpose.msra.mxu0 0.0
    %480 = vmatprep.subr.mxu0 0.0
    %481 = vmatpush1.xpose.msra.mxu0 0.0
    %482 = vmatprep.subr.mxu0 0.0
    %483 = vmatpush1.xpose.msra.mxu0 0.0
    %484 = vmatprep.subr.mxu0 0.0
    %485 = vmatpush1.xpose.msra.mxu0 0.0
    %486 = vmatprep.subr.mxu0 0.0
    %487 = vmatpush1.xpose.msra.mxu0 0.0
    %488 = vmatprep.subr.mxu0 0.0
    %489 = vmatpush1.xpose.msra.mxu0 0.0
    %490 = vmatprep.subr.mxu0 0.0
    %491 = vmatpush1.xpose.msra.mxu0 0.0
    %492 = vmatprep.subr.mxu0 0.0
    %493 = vmatpush1.xpose.msra.mxu0 0.0
    %494 = vmatprep.subr.mxu0 0.0
    %495 = vmatpush1.xpose.msra.mxu0 0.0
    %496 = vmatprep.subr.mxu0 0.0
    %497 = vmatpush1.xpose.msra.mxu0 0.0
    %498 = vmatprep.subr.mxu0 0.0
    %499 = vmatpush1.xpose.msra.mxu0 0.0
    %500 = vmatprep.subr.mxu0 0.0
    %501 = vmatpush1.xpose.msra.mxu0 0.0
    %502 = vmatprep.subr.mxu0 0.0
    %503 = vmatpush1.xpose.msra.mxu0 0.0
    %504 = vmatprep.subr.mxu0 0.0
    %505 = vmatpush1.xpose.msra.mxu0 0.0
    %506 = vmatprep.subr.mxu0 0.0
    %507 = vmatpush1.xpose.msra.mxu0 0.0
    %508 = vmatprep.subr.mxu0 0.0
    %509 = vmatpush1.xpose.msra.mxu0 0.0
    %510 = vmatprep.subr.mxu0 0.0
    %511 = vmatpush1.xpose.msra.mxu0 0.0
    %512 = vmatprep.subr.mxu0 0.0
    %513 = vmatpush1.xpose.msra.mxu0 0.0
    %514 = vmatprep.subr.mxu0 0.0
    %515 = vmatpush1.xpose.msra.mxu0 0.0
    %516 = vmatprep.subr.mxu0 0.0
    %517 = vmatpush1.xpose.msra.mxu0 0.0
    %518 = vmatprep.subr.mxu0 0.0
    %519 = vmatpush1.xpose.msra.mxu0 0.0
    %520 = vmatprep.subr.mxu0 0.0
    %521 = vmatpush1.xpose.msra.mxu0 0.0
    %522 = vmatprep.subr.mxu0 0.0
    %523 = vmatpush1.xpose.msra.mxu0 0.0
    %524 = vmatprep.subr.mxu0 0.0
    %525 = vmatpush1.xpose.msra.mxu0 0.0
    %526 = vmatprep.subr.mxu0 0.0
    %527 = vmatpush1.xpose.msra.mxu0 0.0
    %528 = vmatprep.subr.mxu0 0.0
    %529 = vmatpush1.xpose.msra.mxu0 0.0
    %530 = vmatprep.subr.mxu0 0.0
    %531 = vmatpush1.xpose.msra.mxu0 0.0
    %532 = vmatprep.subr.mxu0 0.0
    %533 = vmatpush1.xpose.msra.mxu0 0.0
    %534 = vmatprep.subr.mxu0 0.0
    %535 = vmatpush1.xpose.msra.mxu0 0.0
    %536 = vmatprep.subr.mxu0 0.0
    %537 = vmatpush1.xpose.msra.mxu0 0.0
    %538 = vmatprep.mubr.f32.mxu0 0.0
    %539 = vmatmul.mubr.f32.gmra.mrb[0].mxu0 %v468
    %v540 = vpop.f32.mrb[0].mxu0
    %v541 = vadd.f32 0.0, %v540
    %v542 = vpop.f32.mrb[0].mxu0
    %543 = vdwg.mxu0
    %v544 = vmul.f32 %v541, 0.35355338
    %545 = vst.msk [vmem:[#allocation2 + $0x10] sm:$0xff] %vm376, %v544
    %546 = vrot.lane.b32.xlu0 %v186, 104
    %v547 = vpop.permute.xlu0 %546
    %548 = vrot.lane.b32.xlu0 %v277, 104
    %v549 = vpop.permute.xlu0 %548
    %550 = vrot.lane.b32.xlu0 %v282, 104
    %v551 = vpop.permute.xlu0 %550
    %v552 = vsel %vm295, %v547, 0
    %v554 = vsel %vm295, %v549, 0
    %v556 = vsel %vm295, %v551, 0
    %558 = vmatprep.subr.mxu0 0.0
    %559 = vmatpush1.xpose.msra.mxu0 %v554
    %560 = vmatprep.subr.mxu0 0.0
    %561 = vmatpush1.xpose.msra.mxu0 %v556
    %562 = vmatprep.subr.mxu0 0.0
    %563 = vmatpush1.xpose.msra.mxu0 0.0
    %564 = vmatprep.subr.mxu0 0.0
    %565 = vmatpush1.xpose.msra.mxu0 0.0
    %566 = vmatprep.subr.mxu0 0.0
    %567 = vmatpush1.xpose.msra.mxu0 0.0
    %568 = vmatprep.subr.mxu0 0.0
    %569 = vmatpush1.xpose.msra.mxu0 0.0
    %570 = vmatprep.subr.mxu0 0.0
    %571 = vmatpush1.xpose.msra.mxu0 0.0
    %572 = vmatprep.subr.mxu0 0.0
    %573 = vmatpush1.xpose.msra.mxu0 0.0
    %574 = vmatprep.subr.mxu0 0.0
    %575 = vmatpush1.xpose.msra.mxu0 0.0
    %576 = vmatprep.subr.mxu0 0.0
    %577 = vmatpush1.xpose.msra.mxu0 0.0
    %578 = vmatprep.subr.mxu0 0.0
    %579 = vmatpush1.xpose.msra.mxu0 0.0
    %580 = vmatprep.subr.mxu0 0.0
    %581 = vmatpush1.xpose.msra.mxu0 0.0
    %582 = vmatprep.subr.mxu0 0.0
    %583 = vmatpush1.xpose.msra.mxu0 0.0
    %584 = vmatprep.subr.mxu0 0.0
    %585 = vmatpush1.xpose.msra.mxu0 0.0
    %586 = vmatprep.subr.mxu0 0.0
    %587 = vmatpush1.xpose.msra.mxu0 0.0
    %588 = vmatprep.subr.mxu0 0.0
    %589 = vmatpush1.xpose.msra.mxu0 0.0
    %590 = vmatprep.subr.mxu0 0.0
    %591 = vmatpush1.xpose.msra.mxu0 0.0
    %592 = vmatprep.subr.mxu0 0.0
    %593 = vmatpush1.xpose.msra.mxu0 0.0
    %594 = vmatprep.subr.mxu0 0.0
    %595 = vmatpush1.xpose.msra.mxu0 0.0
    %596 = vmatprep.subr.mxu0 0.0
    %597 = vmatpush1.xpose.msra.mxu0 0.0
    %598 = vmatprep.subr.mxu0 0.0
    %599 = vmatpush1.xpose.msra.mxu0 0.0
    %600 = vmatprep.subr.mxu0 0.0
    %601 = vmatpush1.xpose.msra.mxu0 0.0
    %602 = vmatprep.subr.mxu0 0.0
    %603 = vmatpush1.xpose.msra.mxu0 0.0
    %604 = vmatprep.subr.mxu0 0.0
    %605 = vmatpush1.xpose.msra.mxu0 0.0
    %606 = vmatprep.subr.mxu0 0.0
    %607 = vmatpush1.xpose.msra.mxu0 0.0
    %608 = vmatprep.subr.mxu0 0.0
    %609 = vmatpush1.xpose.msra.mxu0 0.0
    %610 = vmatprep.subr.mxu0 0.0
    %611 = vmatpush1.xpose.msra.mxu0 0.0
    %612 = vmatprep.subr.mxu0 0.0
    %613 = vmatpush1.xpose.msra.mxu0 0.0
    %614 = vmatprep.subr.mxu0 0.0
    %615 = vmatpush1.xpose.msra.mxu0 0.0
    %616 = vmatprep.subr.mxu0 0.0
    %617 = vmatpush1.xpose.msra.mxu0 0.0
    %618 = vmatprep.subr.mxu0 0.0
    %619 = vmatpush1.xpose.msra.mxu0 0.0
    %620 = vmatprep.subr.mxu0 0.0
    %621 = vmatpush1.xpose.msra.mxu0 0.0
    %622 = vmatprep.mubr.f32.mxu0 0.0
    %623 = vmatmul.mubr.f32.gmra.mrb[0].mxu0 %v552
    %v624 = vpop.f32.mrb[0].mxu0
    %v625 = vadd.f32 0.0, %v624
    %v626 = vpop.f32.mrb[0].mxu0
    %627 = vdwg.mxu0
    %v628 = vmul.f32 %v625, 0.35355338
    %629 = vst.msk [vmem:[#allocation2 + $0x18] sm:$0xff] %vm376, %v628
    %v631 = vsel %vm295, %v191, 0
    %v634 = vsel %vm295, %v287, 0
    %v637 = vsel %vm295, %v292, 0
    %639 = vmatprep.subr.mxu0 0.0
    %640 = vmatpush1.xpose.msra.mxu0 %v634
    %641 = vmatprep.subr.mxu0 0.0
    %642 = vmatpush1.xpose.msra.mxu0 %v637
    %643 = vmatprep.subr.mxu0 0.0
    %644 = vmatpush1.xpose.msra.mxu0 0.0
    %645 = vmatprep.subr.mxu0 0.0
    %646 = vmatpush1.xpose.msra.mxu0 0.0
    %647 = vmatprep.subr.mxu0 0.0
    %648 = vmatpush1.xpose.msra.mxu0 0.0
    %649 = vmatprep.subr.mxu0 0.0
    %650 = vmatpush1.xpose.msra.mxu0 0.0
    %651 = vmatprep.subr.mxu0 0.0
    %652 = vmatpush1.xpose.msra.mxu0 0.0
    %653 = vmatprep.subr.mxu0 0.0
    %654 = vmatpush1.xpose.msra.mxu0 0.0
    %655 = vmatprep.subr.mxu0 0.0
    %656 = vmatpush1.xpose.msra.mxu0 0.0
    %657 = vmatprep.subr.mxu0 0.0
    %658 = vmatpush1.xpose.msra.mxu0 0.0
    %659 = vmatprep.subr.mxu0 0.0
    %660 = vmatpush1.xpose.msra.mxu0 0.0
    %661 = vmatprep.subr.mxu0 0.0
    %662 = vmatpush1.xpose.msra.mxu0 0.0
    %663 = vmatprep.subr.mxu0 0.0
    %664 = vmatpush1.xpose.msra.mxu0 0.0
    %665 = vmatprep.subr.mxu0 0.0
    %666 = vmatpush1.xpose.msra.mxu0 0.0
    %667 = vmatprep.subr.mxu0 0.0
    %668 = vmatpush1.xpose.msra.mxu0 0.0
    %669 = vmatprep.subr.mxu0 0.0
    %670 = vmatpush1.xpose.msra.mxu0 0.0
    %671 = vmatprep.subr.mxu0 0.0
    %672 = vmatpush1.xpose.msra.mxu0 0.0
    %673 = vmatprep.subr.mxu0 0.0
    %674 = vmatpush1.xpose.msra.mxu0 0.0
    %675 = vmatprep.subr.mxu0 0.0
    %676 = vmatpush1.xpose.msra.mxu0 0.0
    %677 = vmatprep.subr.mxu0 0.0
    %678 = vmatpush1.xpose.msra.mxu0 0.0
    %679 = vmatprep.subr.mxu0 0.0
    %680 = vmatpush1.xpose.msra.mxu0 0.0
    %681 = vmatprep.subr.mxu0 0.0
    %682 = vmatpush1.xpose.msra.mxu0 0.0
    %683 = vmatprep.subr.mxu0 0.0
    %684 = vmatpush1.xpose.msra.mxu0 0.0
    %685 = vmatprep.subr.mxu0 0.0
    %686 = vmatpush1.xpose.msra.mxu0 0.0
    %687 = vmatprep.subr.mxu0 0.0
    %688 = vmatpush1.xpose.msra.mxu0 0.0
    %689 = vmatprep.subr.mxu0 0.0
    %690 = vmatpush1.xpose.msra.mxu0 0.0
    %691 = vmatprep.subr.mxu0 0.0
    %692 = vmatpush1.xpose.msra.mxu0 0.0
    %693 = vmatprep.subr.mxu0 0.0
    %694 = vmatpush1.xpose.msra.mxu0 0.0
    %695 = vmatprep.subr.mxu0 0.0
    %696 = vmatpush1.xpose.msra.mxu0 0.0
    %697 = vmatprep.subr.mxu0 0.0
    %698 = vmatpush1.xpose.msra.mxu0 0.0
    %699 = vmatprep.subr.mxu0 0.0
    %700 = vmatpush1.xpose.msra.mxu0 0.0
    %701 = vmatprep.subr.mxu0 0.0
    %702 = vmatpush1.xpose.msra.mxu0 0.0
    %703 = vmatprep.mubr.f32.mxu0 0.0
    %704 = vmatmul.mubr.f32.gmra.mrb[0].mxu0 %v631
    %v705 = vpop.f32.mrb[0].mxu0
    %v706 = vadd.f32 0.0, %v705
    %v707 = vpop.f32.mrb[0].mxu0
    %708 = vdwg.mxu0
    %v709 = vmul.f32 %v706, 0.35355338
    %710 = vst.msk [vmem:[#allocation2 + $0x20] sm:$0xff] %vm376, %v709
    %711 = vrot.lane.b32.xlu0 %v191, 120
    %v712 = vpop.permute.xlu0 %711
    %713 = vrot.lane.b32.xlu0 %v287, 120
    %v714 = vpop.permute.xlu0 %713
    %715 = vrot.lane.b32.xlu0 %v292, 120
    %v716 = vpop.permute.xlu0 %715
    %v717 = vsel %vm295, %v712, 0
    %v719 = vsel %vm295, %v714, 0
    %v721 = vsel %vm295, %v716, 0
    %723 = vmatprep.subr.mxu0 0.0
    %724 = vmatpush1.xpose.msra.mxu0 %v719
    %725 = vmatprep.subr.mxu0 0.0
    %726 = vmatpush1.xpose.msra.mxu0 %v721
    %727 = vmatprep.subr.mxu0 0.0
    %728 = vmatpush1.xpose.msra.mxu0 0.0
    %729 = vmatprep.subr.mxu0 0.0
    %730 = vmatpush1.xpose.msra.mxu0 0.0
    %731 = vmatprep.subr.mxu0 0.0
    %732 = vmatpush1.xpose.msra.mxu0 0.0
    %733 = vmatprep.subr.mxu0 0.0
    %734 = vmatpush1.xpose.msra.mxu0 0.0
    %735 = vmatprep.subr.mxu0 0.0
    %736 = vmatpush1.xpose.msra.mxu0 0.0
    %737 = vmatprep.subr.mxu0 0.0
    %738 = vmatpush1.xpose.msra.mxu0 0.0
    %739 = vmatprep.subr.mxu0 0.0
    %740 = vmatpush1.xpose.msra.mxu0 0.0
    %741 = vmatprep.subr.mxu0 0.0
    %742 = vmatpush1.xpose.msra.mxu0 0.0
    %743 = vmatprep.subr.mxu0 0.0
    %744 = vmatpush1.xpose.msra.mxu0 0.0
    %745 = vmatprep.subr.mxu0 0.0
    %746 = vmatpush1.xpose.msra.mxu0 0.0
    %747 = vmatprep.subr.mxu0 0.0
    %748 = vmatpush1.xpose.msra.mxu0 0.0
    %749 = vmatprep.subr.mxu0 0.0
    %750 = vmatpush1.xpose.msra.mxu0 0.0
    %751 = vmatprep.subr.mxu0 0.0
    %752 = vmatpush1.xpose.msra.mxu0 0.0
    %753 = vmatprep.subr.mxu0 0.0
    %754 = vmatpush1.xpose.msra.mxu0 0.0
    %755 = vmatprep.subr.mxu0 0.0
    %756 = vmatpush1.xpose.msra.mxu0 0.0
    %757 = vmatprep.subr.mxu0 0.0
    %758 = vmatpush1.xpose.msra.mxu0 0.0
    %759 = vmatprep.subr.mxu0 0.0
    %760 = vmatpush1.xpose.msra.mxu0 0.0
    %761 = vmatprep.subr.mxu0 0.0
    %762 = vmatpush1.xpose.msra.mxu0 0.0
    %763 = vmatprep.subr.mxu0 0.0
    %764 = vmatpush1.xpose.msra.mxu0 0.0
    %765 = vmatprep.subr.mxu0 0.0
    %766 = vmatpush1.xpose.msra.mxu0 0.0
    %767 = vmatprep.subr.mxu0 0.0
    %768 = vmatpush1.xpose.msra.mxu0 0.0
    %769 = vmatprep.subr.mxu0 0.0
    %770 = vmatpush1.xpose.msra.mxu0 0.0
    %771 = vmatprep.subr.mxu0 0.0
    %772 = vmatpush1.xpose.msra.mxu0 0.0
    %773 = vmatprep.subr.mxu0 0.0
    %774 = vmatpush1.xpose.msra.mxu0 0.0
    %775 = vmatprep.subr.mxu0 0.0
    %776 = vmatpush1.xpose.msra.mxu0 0.0
    %777 = vmatprep.subr.mxu0 0.0
    %778 = vmatpush1.xpose.msra.mxu0 0.0
    %779 = vmatprep.subr.mxu0 0.0
    %780 = vmatpush1.xpose.msra.mxu0 0.0
    %781 = vmatprep.subr.mxu0 0.0
    %782 = vmatpush1.xpose.msra.mxu0 0.0
    %783 = vmatprep.subr.mxu0 0.0
    %784 = vmatpush1.xpose.msra.mxu0 0.0
    %785 = vmatprep.subr.mxu0 0.0
    %786 = vmatpush1.xpose.msra.mxu0 0.0
    %787 = vmatprep.mubr.f32.mxu0 0.0
    %788 = vmatmul.mubr.f32.gmra.mrb[0].mxu0 %v717
    %v789 = vpop.f32.mrb[0].mxu0
    %v790 = vadd.f32 0.0, %v789
    %v791 = vpop.f32.mrb[0].mxu0
    %792 = vdwg.mxu0
    %v793 = vmul.f32 %v790, 0.35355338
    %794 = vst.msk [vmem:[#allocation2 + $0x28] sm:$0xff] %vm376, %v793
    %795 = vrot.lane.b32.xlu0 %v191, 112
    %v796 = vpop.permute.xlu0 %795
    %797 = vrot.lane.b32.xlu0 %v287, 112
    %v798 = vpop.permute.xlu0 %797
    %799 = vrot.lane.b32.xlu0 %v292, 112
    %v800 = vpop.permute.xlu0 %799
    %v801 = vsel %vm295, %v796, 0
    %v803 = vsel %vm295, %v798, 0
    %v805 = vsel %vm295, %v800, 0
    %807 = vmatprep.subr.mxu0 0.0
    %808 = vmatpush1.xpose.msra.mxu0 %v803
    %809 = vmatprep.subr.mxu0 0.0
    %810 = vmatpush1.xpose.msra.mxu0 %v805
    %811 = vmatprep.subr.mxu0 0.0
    %812 = vmatpush1.xpose.msra.mxu0 0.0
    %813 = vmatprep.subr.mxu0 0.0
    %814 = vmatpush1.xpose.msra.mxu0 0.0
    %815 = vmatprep.subr.mxu0 0.0
    %816 = vmatpush1.xpose.msra.mxu0 0.0
    %817 = vmatprep.subr.mxu0 0.0
    %818 = vmatpush1.xpose.msra.mxu0 0.0
    %819 = vmatprep.subr.mxu0 0.0
    %820 = vmatpush1.xpose.msra.mxu0 0.0
    %821 = vmatprep.subr.mxu0 0.0
    %822 = vmatpush1.xpose.msra.mxu0 0.0
    %823 = vmatprep.subr.mxu0 0.0
    %824 = vmatpush1.xpose.msra.mxu0 0.0
    %825 = vmatprep.subr.mxu0 0.0
    %826 = vmatpush1.xpose.msra.mxu0 0.0
    %827 = vmatprep.subr.mxu0 0.0
    %828 = vmatpush1.xpose.msra.mxu0 0.0
    %829 = vmatprep.subr.mxu0 0.0
    %830 = vmatpush1.xpose.msra.mxu0 0.0
    %831 = vmatprep.subr.mxu0 0.0
    %832 = vmatpush1.xpose.msra.mxu0 0.0
    %833 = vmatprep.subr.mxu0 0.0
    %834 = vmatpush1.xpose.msra.mxu0 0.0
    %835 = vmatprep.subr.mxu0 0.0
    %836 = vmatpush1.xpose.msra.mxu0 0.0
    %837 = vmatprep.subr.mxu0 0.0
    %838 = vmatpush1.xpose.msra.mxu0 0.0
    %839 = vmatprep.subr.mxu0 0.0
    %840 = vmatpush1.xpose.msra.mxu0 0.0
    %841 = vmatprep.subr.mxu0 0.0
    %842 = vmatpush1.xpose.msra.mxu0 0.0
    %843 = vmatprep.subr.mxu0 0.0
    %844 = vmatpush1.xpose.msra.mxu0 0.0
    %845 = vmatprep.subr.mxu0 0.0
    %846 = vmatpush1.xpose.msra.mxu0 0.0
    %847 = vmatprep.subr.mxu0 0.0
    %848 = vmatpush1.xpose.msra.mxu0 0.0
    %849 = vmatprep.subr.mxu0 0.0
    %850 = vmatpush1.xpose.msra.mxu0 0.0
    %851 = vmatprep.subr.mxu0 0.0
    %852 = vmatpush1.xpose.msra.mxu0 0.0
    %853 = vmatprep.subr.mxu0 0.0
    %854 = vmatpush1.xpose.msra.mxu0 0.0
    %855 = vmatprep.subr.mxu0 0.0
    %856 = vmatpush1.xpose.msra.mxu0 0.0
    %857 = vmatprep.subr.mxu0 0.0
    %858 = vmatpush1.xpose.msra.mxu0 0.0
    %859 = vmatprep.subr.mxu0 0.0
    %860 = vmatpush1.xpose.msra.mxu0 0.0
    %861 = vmatprep.subr.mxu0 0.0
    %862 = vmatpush1.xpose.msra.mxu0 0.0
    %863 = vmatprep.subr.mxu0 0.0
    %864 = vmatpush1.xpose.msra.mxu0 0.0
    %865 = vmatprep.subr.mxu0 0.0
    %866 = vmatpush1.xpose.msra.mxu0 0.0
    %867 = vmatprep.subr.mxu0 0.0
    %868 = vmatpush1.xpose.msra.mxu0 0.0
    %869 = vmatprep.subr.mxu0 0.0
    %870 = vmatpush1.xpose.msra.mxu0 0.0
    %871 = vmatprep.mubr.f32.mxu0 0.0
    %872 = vmatmul.mubr.f32.gmra.mrb[0].mxu0 %v801
    %v873 = vpop.f32.mrb[0].mxu0
    %v874 = vadd.f32 0.0, %v873
    %v875 = vpop.f32.mrb[0].mxu0
    %876 = vdwg.mxu0
    %v877 = vmul.f32 %v874, 0.35355338
    %878 = vst.msk [vmem:[#allocation2 + $0x30] sm:$0xff] %vm376, %v877
    %879 = vrot.lane.b32.xlu0 %v191, 104
    %v880 = vpop.permute.xlu0 %879
    %881 = vrot.lane.b32.xlu0 %v287, 104
    %v882 = vpop.permute.xlu0 %881
    %883 = vrot.lane.b32.xlu0 %v292, 104
    %v884 = vpop.permute.xlu0 %883
    %v885 = vsel %vm295, %v880, 0
    %v887 = vsel %vm295, %v882, 0
    %v889 = vsel %vm295, %v884, 0
    %891 = vmatprep.subr.mxu0 0.0
    %892 = vmatpush1.xpose.msra.mxu0 %v887
    %893 = vmatprep.subr.mxu0 0.0
    %894 = vmatpush1.xpose.msra.mxu0 %v889
    %895 = vmatprep.subr.mxu0 0.0
    %896 = vmatpush1.xpose.msra.mxu0 0.0
    %897 = vmatprep.subr.mxu0 0.0
    %898 = vmatpush1.xpose.msra.mxu0 0.0
    %899 = vmatprep.subr.mxu0 0.0
    %900 = vmatpush1.xpose.msra.mxu0 0.0
    %901 = vmatprep.subr.mxu0 0.0
    %902 = vmatpush1.xpose.msra.mxu0 0.0
    %903 = vmatprep.subr.mxu0 0.0
    %904 = vmatpush1.xpose.msra.mxu0 0.0
    %905 = vmatprep.subr.mxu0 0.0
    %906 = vmatpush1.xpose.msra.mxu0 0.0
    %907 = vmatprep.subr.mxu0 0.0
    %908 = vmatpush1.xpose.msra.mxu0 0.0
    %909 = vmatprep.subr.mxu0 0.0
    %910 = vmatpush1.xpose.msra.mxu0 0.0
    %911 = vmatprep.subr.mxu0 0.0
    %912 = vmatpush1.xpose.msra.mxu0 0.0
    %913 = vmatprep.subr.mxu0 0.0
    %914 = vmatpush1.xpose.msra.mxu0 0.0
    %915 = vmatprep.subr.mxu0 0.0
    %916 = vmatpush1.xpose.msra.mxu0 0.0
    %917 = vmatprep.subr.mxu0 0.0
    %918 = vmatpush1.xpose.msra.mxu0 0.0
    %919 = vmatprep.subr.mxu0 0.0
    %920 = vmatpush1.xpose.msra.mxu0 0.0
    %921 = vmatprep.subr.mxu0 0.0
    %922 = vmatpush1.xpose.msra.mxu0 0.0
    %923 = vmatprep.subr.mxu0 0.0
    %924 = vmatpush1.xpose.msra.mxu0 0.0
    %925 = vmatprep.subr.mxu0 0.0
    %926 = vmatpush1.xpose.msra.mxu0 0.0
    %927 = vmatprep.subr.mxu0 0.0
    %928 = vmatpush1.xpose.msra.mxu0 0.0
    %929 = vmatprep.subr.mxu0 0.0
    %930 = vmatpush1.xpose.msra.mxu0 0.0
    %931 = vmatprep.subr.mxu0 0.0
    %932 = vmatpush1.xpose.msra.mxu0 0.0
    %933 = vmatprep.subr.mxu0 0.0
    %934 = vmatpush1.xpose.msra.mxu0 0.0
    %935 = vmatprep.subr.mxu0 0.0
    %936 = vmatpush1.xpose.msra.mxu0 0.0
    %937 = vmatprep.subr.mxu0 0.0
    %938 = vmatpush1.xpose.msra.mxu0 0.0
    %939 = vmatprep.subr.mxu0 0.0
    %940 = vmatpush1.xpose.msra.mxu0 0.0
    %941 = vmatprep.subr.mxu0 0.0
    %942 = vmatpush1.xpose.msra.mxu0 0.0
    %943 = vmatprep.subr.mxu0 0.0
    %944 = vmatpush1.xpose.msra.mxu0 0.0
    %945 = vmatprep.subr.mxu0 0.0
    %946 = vmatpush1.xpose.msra.mxu0 0.0
    %947 = vmatprep.subr.mxu0 0.0
    %948 = vmatpush1.xpose.msra.mxu0 0.0
    %949 = vmatprep.subr.mxu0 0.0
    %950 = vmatpush1.xpose.msra.mxu0 0.0
    %951 = vmatprep.subr.mxu0 0.0
    %952 = vmatpush1.xpose.msra.mxu0 0.0
    %953 = vmatprep.subr.mxu0 0.0
    %954 = vmatpush1.xpose.msra.mxu0 0.0
    %955 = vmatprep.mubr.f32.mxu0 0.0
    %956 = vmatmul.mubr.f32.gmra.mrb[0].mxu0 %v885
    %v957 = vpop.f32.mrb[0].mxu0
    %v958 = vadd.f32 0.0, %v957
    %v959 = vpop.f32.mrb[0].mxu0
    %960 = vdwg.mxu0
    %v961 = vmul.f32 %v958, 0.35355338
    %962 = vst.msk [vmem:[#allocation2 + $0x38] sm:$0xff] %vm376, %v961
    %v963 = vld [vmem:[#allocation2] sm:$0xff]
    %v964 = vld [vmem:[#allocation2 + $0x8] sm:$0xff]
    %v965 = vld [vmem:[#allocation2 + $0x10] sm:$0xff]
    %v966 = vld [vmem:[#allocation2 + $0x18] sm:$0xff]
    %v967 = vld [vmem:[#allocation2 + $0x20] sm:$0xff]
    %v968 = vld [vmem:[#allocation2 + $0x28] sm:$0xff]
    %v969 = vld [vmem:[#allocation2 + $0x30] sm:$0xff]
    %v970 = vld [vmem:[#allocation2 + $0x38] sm:$0xff]
    %v971 = vsel %vm376, %v963, -inf
    %972 = vmax.xlane.f32.xlu0 %v971
    %v973 = vpop.xlane.xlu0 %972
    %v974 = vsel %vm376, %v964, -inf
    %975 = vmax.xlane.f32.xlu0 %v974
    %v976 = vpop.xlane.xlu0 %975
    %v977 = vsel %vm376, %v965, -inf
    %978 = vmax.xlane.f32.xlu0 %v977
    %v979 = vpop.xlane.xlu0 %978
    %v980 = vsel %vm376, %v966, -inf
    %981 = vmax.xlane.f32.xlu0 %v980
    %v982 = vpop.xlane.xlu0 %981
    %v983 = vsel %vm376, %v967, -inf
    %984 = vmax.xlane.f32.xlu0 %v983
    %v985 = vpop.xlane.xlu0 %984
    %v986 = vsel %vm376, %v968, -inf
    %987 = vmax.xlane.f32.xlu0 %v986
    %v988 = vpop.xlane.xlu0 %987
    %v989 = vsel %vm376, %v969, -inf
    %990 = vmax.xlane.f32.xlu0 %v989
    %v991 = vpop.xlane.xlu0 %990
    %v992 = vsel %vm376, %v970, -inf
    %993 = vmax.xlane.f32.xlu0 %v992
    %v994 = vpop.xlane.xlu0 %993
    %v995 = vsub.f32 %v963, %v973
    %v996 = vsub.f32 %v964, %v976
    %v997 = vsub.f32 %v965, %v979
    %v998 = vsub.f32 %v966, %v982
    %v999 = vsub.f32 %v967, %v985
    %v1000 = vsub.f32 %v968, %v988
    %v1001 = vsub.f32 %v969, %v991
    %v1002 = vsub.f32 %v970, %v994
    %v1003 = vmul.f32 %v995, 1.442695
    %v1004 = vpow.pop %v1003
    %v1005 = vmul.f32 %v996, 1.442695
    %v1006 = vpow.pop %v1005
    %v1007 = vmul.f32 %v997, 1.442695
    %v1008 = vpow.pop %v1007
    %v1009 = vmul.f32 %v998, 1.442695
    %v1010 = vpow.pop %v1009
    %v1011 = vmul.f32 %v999, 1.442695
    %v1012 = vpow.pop %v1011
    %v1013 = vmul.f32 %v1000, 1.442695
    %v1014 = vpow.pop %v1013
    %v1015 = vmul.f32 %v1001, 1.442695
    %v1016 = vpow.pop %v1015
    %v1017 = vmul.f32 %v1002, 1.442695
    %v1018 = vpow.pop %v1017
    %v1019 = vsel %vm376, %v1004, 0.0
    %1020 = vadd.xlane.f32.xlu0 %v1019
    %v1021 = vpop.xlane.xlu0 %1020
    %v1022 = vsel %vm376, %v1006, 0.0
    %1023 = vadd.xlane.f32.xlu0 %v1022
    %v1024 = vpop.xlane.xlu0 %1023
    %v1025 = vsel %vm376, %v1008, 0.0
    %1026 = vadd.xlane.f32.xlu0 %v1025
    %v1027 = vpop.xlane.xlu0 %1026
    %v1028 = vsel %vm376, %v1010, 0.0
    %1029 = vadd.xlane.f32.xlu0 %v1028
    %v1030 = vpop.xlane.xlu0 %1029
    %v1031 = vsel %vm376, %v1012, 0.0
    %1032 = vadd.xlane.f32.xlu0 %v1031
    %v1033 = vpop.xlane.xlu0 %1032
    %v1034 = vsel %vm376, %v1014, 0.0
    %1035 = vadd.xlane.f32.xlu0 %v1034
    %v1036 = vpop.xlane.xlu0 %1035
    %v1037 = vsel %vm376, %v1016, 0.0
    %1038 = vadd.xlane.f32.xlu0 %v1037
    %v1039 = vpop.xlane.xlu0 %1038
    %v1040 = vsel %vm376, %v1018, 0.0
    %1041 = vadd.xlane.f32.xlu0 %v1040
    %v1042 = vpop.xlane.xlu0 %1041
    %v1043 = vrcp.pop %v1021
    %v1044 = vrcp.pop %v1024
    %v1045 = vrcp.pop %v1027
    %v1046 = vrcp.pop %v1030
    %v1047 = vrcp.pop %v1033
    %v1048 = vrcp.pop %v1036
    %v1049 = vrcp.pop %v1039
    %v1050 = vrcp.pop %v1042
    %v1051 = vmul.f32 %v1004, %v1043
    %v1052 = vmul.f32 %v1006, %v1044
    %v1053 = vmul.f32 %v1008, %v1045
    %v1054 = vmul.f32 %v1010, %v1046
    %v1055 = vmul.f32 %v1012, %v1047
    %v1056 = vmul.f32 %v1014, %v1048
    %v1057 = vmul.f32 %v1016, %v1049
    %v1058 = vmul.f32 %v1018, %v1050
    %1059 = vst.msk [vmem:[#allocation2] sm:$0xff] %vm376, %v1051
    %1060 = vst.msk [vmem:[#allocation2 + $0x8] sm:$0xff] %vm376, %v1052
    %1061 = vst.msk [vmem:[#allocation2 + $0x10] sm:$0xff] %vm376, %v1053
    %1062 = vst.msk [vmem:[#allocation2 + $0x18] sm:$0xff] %vm376, %v1054
    %1063 = vst.msk [vmem:[#allocation2 + $0x20] sm:$0xff] %vm376, %v1055
    %1064 = vst.msk [vmem:[#allocation2 + $0x28] sm:$0xff] %vm376, %v1056
    %1065 = vst.msk [vmem:[#allocation2 + $0x30] sm:$0xff] %vm376, %v1057
    %1066 = vst.msk [vmem:[#allocation2 + $0x38] sm:$0xff] %vm376, %v1058
    %v1067 = vld [vmem:[#allocation2] sm:$0xff]
    %1068 = vst.msk [vmem:[#allocation13] sm:$0xff] %vm376, %v1067
    %1069 = vrot.lane.b32.xlu0 %v277, 96
    %v1070 = vpop.permute.xlu0 %1069
    %1071 = vrot.lane.b32.xlu0 %v282, 96
    %v1072 = vpop.permute.xlu0 %1071
    %v1076 = vsel %vm376, %v1067, 0
    %1078 = vmatprep.subr.mxu0 0.0
    %1079 = vmatpush1.msra.mxu0 %v1070
    %1080 = vmatprep.subr.mxu0 0.0
    %1081 = vmatpush1.msra.mxu0 %v1072
    %1082 = vmatprep.subr.mxu0 0.0
    %1083 = vmatpush1.msra.mxu0 0.0
    %1084 = vmatprep.subr.mxu0 0.0
    %1085 = vmatpush1.msra.mxu0 0.0
    %1086 = vmatprep.subr.mxu0 0.0
    %1087 = vmatpush1.msra.mxu0 0.0
    %1088 = vmatprep.subr.mxu0 0.0
    %1089 = vmatpush1.msra.mxu0 0.0
    %1090 = vmatprep.subr.mxu0 0.0
    %1091 = vmatpush1.msra.mxu0 0.0
    %1092 = vmatprep.subr.mxu0 0.0
    %1093 = vmatpush1.msra.mxu0 0.0
    %1094 = vmatprep.subr.mxu0 0.0
    %1095 = vmatpush1.msra.mxu0 0.0
    %1096 = vmatprep.subr.mxu0 0.0
    %1097 = vmatpush1.msra.mxu0 0.0
    %1098 = vmatprep.subr.mxu0 0.0
    %1099 = vmatpush1.msra.mxu0 0.0
    %1100 = vmatprep.subr.mxu0 0.0
    %1101 = vmatpush1.msra.mxu0 0.0
    %1102 = vmatprep.subr.mxu0 0.0
    %1103 = vmatpush1.msra.mxu0 0.0
    %1104 = vmatprep.subr.mxu0 0.0
    %1105 = vmatpush1.msra.mxu0 0.0
    %1106 = vmatprep.subr.mxu0 0.0
    %1107 = vmatpush1.msra.mxu0 0.0
    %1108 = vmatprep.subr.mxu0 0.0
    %1109 = vmatpush1.msra.mxu0 0.0
    %1110 = vmatprep.subr.mxu0 0.0
    %1111 = vmatpush1.msra.mxu0 0.0
    %1112 = vmatprep.subr.mxu0 0.0
    %1113 = vmatpush1.msra.mxu0 0.0
    %1114 = vmatprep.subr.mxu0 0.0
    %1115 = vmatpush1.msra.mxu0 0.0
    %1116 = vmatprep.subr.mxu0 0.0
    %1117 = vmatpush1.msra.mxu0 0.0
    %1118 = vmatprep.subr.mxu0 0.0
    %1119 = vmatpush1.msra.mxu0 0.0
    %1120 = vmatprep.subr.mxu0 0.0
    %1121 = vmatpush1.msra.mxu0 0.0
    %1122 = vmatprep.subr.mxu0 0.0
    %1123 = vmatpush1.msra.mxu0 0.0
    %1124 = vmatprep.subr.mxu0 0.0
    %1125 = vmatpush1.msra.mxu0 0.0
    %1126 = vmatprep.subr.mxu0 0.0
    %1127 = vmatpush1.msra.mxu0 0.0
    %1128 = vmatprep.subr.mxu0 0.0
    %1129 = vmatpush1.msra.mxu0 0.0
    %1130 = vmatprep.subr.mxu0 0.0
    %1131 = vmatpush1.msra.mxu0 0.0
    %1132 = vmatprep.subr.mxu0 0.0
    %1133 = vmatpush1.msra.mxu0 0.0
    %1134 = vmatprep.subr.mxu0 0.0
    %1135 = vmatpush1.msra.mxu0 0.0
    %1136 = vmatprep.subr.mxu0 0.0
    %1137 = vmatpush1.msra.mxu0 0.0
    %1138 = vmatprep.subr.mxu0 0.0
    %1139 = vmatpush1.msra.mxu0 0.0
    %1140 = vmatprep.subr.mxu0 0.0
    %1141 = vmatpush1.msra.mxu0 0.0
    %1142 = vmatprep.mubr.f32.mxu0 0.0
    %1143 = vmatmul.mubr.f32.gmra.mrb[0].mxu0 %v1076
    %v1144 = vpop.f32.mrb[0].mxu0
    %v1145 = vadd.f32 0.0, %v1144
    %v1146 = vpop.f32.mrb[0].mxu0
    %1147 = vdwg.mxu0
    %1148 = vst.msk [vmem:[#allocation3] sm:$0xff] %vm295, %v1145
    %v1149 = vld [vmem:[#allocation2 + $0x8] sm:$0xff]
    %s1150 = scalar_lea.vmem [#allocation13], 16
    %1151 = vst.msk [vmem:[%s1150] sm:$0xff] %vm376, %v1149
    %1152 = vrot.lane.b32.xlu0 %v277, 88
    %v1153 = vpop.permute.xlu0 %1152
    %1154 = vrot.lane.b32.xlu0 %v282, 88
    %v1155 = vpop.permute.xlu0 %1154
    %v1159 = vsel %vm376, %v1149, 0
    %1161 = vmatprep.subr.mxu0 0.0
    %1162 = vmatpush1.msra.mxu0 %v1153
    %1163 = vmatprep.subr.mxu0 0.0
    %1164 = vmatpush1.msra.mxu0 %v1155
    %1165 = vmatprep.subr.mxu0 0.0
    %1166 = vmatpush1.msra.mxu0 0.0
    %1167 = vmatprep.subr.mxu0 0.0
    %1168 = vmatpush1.msra.mxu0 0.0
    %1169 = vmatprep.subr.mxu0 0.0
    %1170 = vmatpush1.msra.mxu0 0.0
    %1171 = vmatprep.subr.mxu0 0.0
    %1172 = vmatpush1.msra.mxu0 0.0
    %1173 = vmatprep.subr.mxu0 0.0
    %1174 = vmatpush1.msra.mxu0 0.0
    %1175 = vmatprep.subr.mxu0 0.0
    %1176 = vmatpush1.msra.mxu0 0.0
    %1177 = vmatprep.subr.mxu0 0.0
    %1178 = vmatpush1.msra.mxu0 0.0
    %1179 = vmatprep.subr.mxu0 0.0
    %1180 = vmatpush1.msra.mxu0 0.0
    %1181 = vmatprep.subr.mxu0 0.0
    %1182 = vmatpush1.msra.mxu0 0.0
    %1183 = vmatprep.subr.mxu0 0.0
    %1184 = vmatpush1.msra.mxu0 0.0
    %1185 = vmatprep.subr.mxu0 0.0
    %1186 = vmatpush1.msra.mxu0 0.0
    %1187 = vmatprep.subr.mxu0 0.0
    %1188 = vmatpush1.msra.mxu0 0.0
    %1189 = vmatprep.subr.mxu0 0.0
    %1190 = vmatpush1.msra.mxu0 0.0
    %1191 = vmatprep.subr.mxu0 0.0
    %1192 = vmatpush1.msra.mxu0 0.0
    %1193 = vmatprep.subr.mxu0 0.0
    %1194 = vmatpush1.msra.mxu0 0.0
    %1195 = vmatprep.subr.mxu0 0.0
    %1196 = vmatpush1.msra.mxu0 0.0
    %1197 = vmatprep.subr.mxu0 0.0
    %1198 = vmatpush1.msra.mxu0 0.0
    %1199 = vmatprep.subr.mxu0 0.0
    %1200 = vmatpush1.msra.mxu0 0.0
    %1201 = vmatprep.subr.mxu0 0.0
    %1202 = vmatpush1.msra.mxu0 0.0
    %1203 = vmatprep.subr.mxu0 0.0
    %1204 = vmatpush1.msra.mxu0 0.0
    %1205 = vmatprep.subr.mxu0 0.0
    %1206 = vmatpush1.msra.mxu0 0.0
    %1207 = vmatprep.subr.mxu0 0.0
    %1208 = vmatpush1.msra.mxu0 0.0
    %1209 = vmatprep.subr.mxu0 0.0
    %1210 = vmatpush1.msra.mxu0 0.0
    %1211 = vmatprep.subr.mxu0 0.0
    %1212 = vmatpush1.msra.mxu0 0.0
    %1213 = vmatprep.subr.mxu0 0.0
    %1214 = vmatpush1.msra.mxu0 0.0
    %1215 = vmatprep.subr.mxu0 0.0
    %1216 = vmatpush1.msra.mxu0 0.0
    %1217 = vmatprep.subr.mxu0 0.0
    %1218 = vmatpush1.msra.mxu0 0.0
    %1219 = vmatprep.subr.mxu0 0.0
    %1220 = vmatpush1.msra.mxu0 0.0
    %1221 = vmatprep.subr.mxu0 0.0
    %1222 = vmatpush1.msra.mxu0 0.0
    %1223 = vmatprep.subr.mxu0 0.0
    %1224 = vmatpush1.msra.mxu0 0.0
    %1225 = vmatprep.mubr.f32.mxu0 0.0
    %1226 = vmatmul.mubr.f32.gmra.mrb[0].mxu0 %v1159
    %v1227 = vpop.f32.mrb[0].mxu0
    %v1228 = vadd.f32 0.0, %v1227
    %v1229 = vpop.f32.mrb[0].mxu0
    %1230 = vdwg.mxu0
    %1232 = vrot.lane.b32.xlu0 %v1228, 8
    %v1233 = vpop.permute.xlu0 %1232
    %vm1235 = vcmask 130112
    %1236 = vst.msk [vmem:[#allocation3] sm:$0xff] %vm1235, %v1233
    %v1237 = vld [vmem:[#allocation2 + $0x10] sm:$0xff]
    %s1238 = scalar_lea.vmem [#allocation13], 32
    %1239 = vst.msk [vmem:[%s1238] sm:$0xff] %vm376, %v1237
    %1240 = vrot.lane.b32.xlu0 %v277, 80
    %v1241 = vpop.permute.xlu0 %1240
    %1242 = vrot.lane.b32.xlu0 %v282, 80
    %v1243 = vpop.permute.xlu0 %1242
    %v1247 = vsel %vm376, %v1237, 0
    %1249 = vmatprep.subr.mxu0 0.0
    %1250 = vmatpush1.msra.mxu0 %v1241
    %1251 = vmatprep.subr.mxu0 0.0
    %1252 = vmatpush1.msra.mxu0 %v1243
    %1253 = vmatprep.subr.mxu0 0.0
    %1254 = vmatpush1.msra.mxu0 0.0
    %1255 = vmatprep.subr.mxu0 0.0
    %1256 = vmatpush1.msra.mxu0 0.0
    %1257 = vmatprep.subr.mxu0 0.0
    %1258 = vmatpush1.msra.mxu0 0.0
    %1259 = vmatprep.subr.mxu0 0.0
    %1260 = vmatpush1.msra.mxu0 0.0
    %1261 = vmatprep.subr.mxu0 0.0
    %1262 = vmatpush1.msra.mxu0 0.0
    %1263 = vmatprep.subr.mxu0 0.0
    %1264 = vmatpush1.msra.mxu0 0.0
    %1265 = vmatprep.subr.mxu0 0.0
    %1266 = vmatpush1.msra.mxu0 0.0
    %1267 = vmatprep.subr.mxu0 0.0
    %1268 = vmatpush1.msra.mxu0 0.0
    %1269 = vmatprep.subr.mxu0 0.0
    %1270 = vmatpush1.msra.mxu0 0.0
    %1271 = vmatprep.subr.mxu0 0.0
    %1272 = vmatpush1.msra.mxu0 0.0
    %1273 = vmatprep.subr.mxu0 0.0
    %1274 = vmatpush1.msra.mxu0 0.0
    %1275 = vmatprep.subr.mxu0 0.0
    %1276 = vmatpush1.msra.mxu0 0.0
    %1277 = vmatprep.subr.mxu0 0.0
    %1278 = vmatpush1.msra.mxu0 0.0
    %1279 = vmatprep.subr.mxu0 0.0
    %1280 = vmatpush1.msra.mxu0 0.0
    %1281 = vmatprep.subr.mxu0 0.0
    %1282 = vmatpush1.msra.mxu0 0.0
    %1283 = vmatprep.subr.mxu0 0.0
    %1284 = vmatpush1.msra.mxu0 0.0
    %1285 = vmatprep.subr.mxu0 0.0
    %1286 = vmatpush1.msra.mxu0 0.0
    %1287 = vmatprep.subr.mxu0 0.0
    %1288 = vmatpush1.msra.mxu0 0.0
    %1289 = vmatprep.subr.mxu0 0.0
    %1290 = vmatpush1.msra.mxu0 0.0
    %1291 = vmatprep.subr.mxu0 0.0
    %1292 = vmatpush1.msra.mxu0 0.0
    %1293 = vmatprep.subr.mxu0 0.0
    %1294 = vmatpush1.msra.mxu0 0.0
    %1295 = vmatprep.subr.mxu0 0.0
    %1296 = vmatpush1.msra.mxu0 0.0
    %1297 = vmatprep.subr.mxu0 0.0
    %1298 = vmatpush1.msra.mxu0 0.0
    %1299 = vmatprep.subr.mxu0 0.0
    %1300 = vmatpush1.msra.mxu0 0.0
    %1301 = vmatprep.subr.mxu0 0.0
    %1302 = vmatpush1.msra.mxu0 0.0
    %1303 = vmatprep.subr.mxu0 0.0
    %1304 = vmatpush1.msra.mxu0 0.0
    %1305 = vmatprep.subr.mxu0 0.0
    %1306 = vmatpush1.msra.mxu0 0.0
    %1307 = vmatprep.subr.mxu0 0.0
    %1308 = vmatpush1.msra.mxu0 0.0
    %1309 = vmatprep.subr.mxu0 0.0
    %1310 = vmatpush1.msra.mxu0 0.0
    %1311 = vmatprep.subr.mxu0 0.0
    %1312 = vmatpush1.msra.mxu0 0.0
    %1313 = vmatprep.mubr.f32.mxu0 0.0
    %1314 = vmatmul.mubr.f32.gmra.mrb[0].mxu0 %v1247
    %v1315 = vpop.f32.mrb[0].mxu0
    %v1316 = vadd.f32 0.0, %v1315
    %v1317 = vpop.f32.mrb[0].mxu0
    %1318 = vdwg.mxu0
    %1320 = vrot.lane.b32.xlu0 %v1316, 16
    %v1321 = vpop.permute.xlu0 %1320
    %vm1323 = vcmask 195712
    %1324 = vst.msk [vmem:[#allocation3] sm:$0xff] %vm1323, %v1321
    %v1325 = vld [vmem:[#allocation2 + $0x18] sm:$0xff]
    %s1326 = scalar_lea.vmem [#allocation13], 48
    %1327 = vst.msk [vmem:[%s1326] sm:$0xff] %vm376, %v1325
    %1328 = vrot.lane.b32.xlu0 %v277, 72
    %v1329 = vpop.permute.xlu0 %1328
    %1330 = vrot.lane.b32.xlu0 %v282, 72
    %v1331 = vpop.permute.xlu0 %1330
    %v1335 = vsel %vm376, %v1325, 0
    %1337 = vmatprep.subr.mxu0 0.0
    %1338 = vmatpush1.msra.mxu0 %v1329
    %1339 = vmatprep.subr.mxu0 0.0
    %1340 = vmatpush1.msra.mxu0 %v1331
    %1341 = vmatprep.subr.mxu0 0.0
    %1342 = vmatpush1.msra.mxu0 0.0
    %1343 = vmatprep.subr.mxu0 0.0
    %1344 = vmatpush1.msra.mxu0 0.0
    %1345 = vmatprep.subr.mxu0 0.0
    %1346 = vmatpush1.msra.mxu0 0.0
    %1347 = vmatprep.subr.mxu0 0.0
    %1348 = vmatpush1.msra.mxu0 0.0
    %1349 = vmatprep.subr.mxu0 0.0
    %1350 = vmatpush1.msra.mxu0 0.0
    %1351 = vmatprep.subr.mxu0 0.0
    %1352 = vmatpush1.msra.mxu0 0.0
    %1353 = vmatprep.subr.mxu0 0.0
    %1354 = vmatpush1.msra.mxu0 0.0
    %1355 = vmatprep.subr.mxu0 0.0
    %1356 = vmatpush1.msra.mxu0 0.0
    %1357 = vmatprep.subr.mxu0 0.0
    %1358 = vmatpush1.msra.mxu0 0.0
    %1359 = vmatprep.subr.mxu0 0.0
    %1360 = vmatpush1.msra.mxu0 0.0
    %1361 = vmatprep.subr.mxu0 0.0
    %1362 = vmatpush1.msra.mxu0 0.0
    %1363 = vmatprep.subr.mxu0 0.0
    %1364 = vmatpush1.msra.mxu0 0.0
    %1365 = vmatprep.subr.mxu0 0.0
    %1366 = vmatpush1.msra.mxu0 0.0
    %1367 = vmatprep.subr.mxu0 0.0
    %1368 = vmatpush1.msra.mxu0 0.0
    %1369 = vmatprep.subr.mxu0 0.0
    %1370 = vmatpush1.msra.mxu0 0.0
    %1371 = vmatprep.subr.mxu0 0.0
    %1372 = vmatpush1.msra.mxu0 0.0
    %1373 = vmatprep.subr.mxu0 0.0
    %1374 = vmatpush1.msra.mxu0 0.0
    %1375 = vmatprep.subr.mxu0 0.0
    %1376 = vmatpush1.msra.mxu0 0.0
    %1377 = vmatprep.subr.mxu0 0.0
    %1378 = vmatpush1.msra.mxu0 0.0
    %1379 = vmatprep.subr.mxu0 0.0
    %1380 = vmatpush1.msra.mxu0 0.0
    %1381 = vmatprep.subr.mxu0 0.0
    %1382 = vmatpush1.msra.mxu0 0.0
    %1383 = vmatprep.subr.mxu0 0.0
    %1384 = vmatpush1.msra.mxu0 0.0
    %1385 = vmatprep.subr.mxu0 0.0
    %1386 = vmatpush1.msra.mxu0 0.0
    %1387 = vmatprep.subr.mxu0 0.0
    %1388 = vmatpush1.msra.mxu0 0.0
    %1389 = vmatprep.subr.mxu0 0.0
    %1390 = vmatpush1.msra.mxu0 0.0
    %1391 = vmatprep.subr.mxu0 0.0
    %1392 = vmatpush1.msra.mxu0 0.0
    %1393 = vmatprep.subr.mxu0 0.0
    %1394 = vmatpush1.msra.mxu0 0.0
    %1395 = vmatprep.subr.mxu0 0.0
    %1396 = vmatpush1.msra.mxu0 0.0
    %1397 = vmatprep.subr.mxu0 0.0
    %1398 = vmatpush1.msra.mxu0 0.0
    %1399 = vmatprep.subr.mxu0 0.0
    %1400 = vmatpush1.msra.mxu0 0.0
    %1401 = vmatprep.mubr.f32.mxu0 0.0
    %1402 = vmatmul.mubr.f32.gmra.mrb[0].mxu0 %v1335
    %v1403 = vpop.f32.mrb[0].mxu0
    %v1404 = vadd.f32 0.0, %v1403
    %v1405 = vpop.f32.mrb[0].mxu0
    %1406 = vdwg.mxu0
    %1408 = vrot.lane.b32.xlu0 %v1404, 24
    %v1409 = vpop.permute.xlu0 %1408
    %vm1411 = vcmask 261312
    %1412 = vst.msk [vmem:[#allocation3] sm:$0xff] %vm1411, %v1409
    %v1413 = vld [vmem:[#allocation2 + $0x20] sm:$0xff]
    %s1414 = scalar_lea.vmem [#allocation13], 8
    %1415 = vst.msk [vmem:[%s1414] sm:$0xff] %vm376, %v1413
    %1416 = vrot.lane.b32.xlu0 %v287, 96
    %v1417 = vpop.permute.xlu0 %1416
    %1418 = vrot.lane.b32.xlu0 %v292, 96
    %v1419 = vpop.permute.xlu0 %1418
    %v1423 = vsel %vm376, %v1413, 0
    %1425 = vmatprep.subr.mxu0 0.0
    %1426 = vmatpush1.msra.mxu0 %v1417
    %1427 = vmatprep.subr.mxu0 0.0
    %1428 = vmatpush1.msra.mxu0 %v1419
    %1429 = vmatprep.subr.mxu0 0.0
    %1430 = vmatpush1.msra.mxu0 0.0
    %1431 = vmatprep.subr.mxu0 0.0
    %1432 = vmatpush1.msra.mxu0 0.0
    %1433 = vmatprep.subr.mxu0 0.0
    %1434 = vmatpush1.msra.mxu0 0.0
    %1435 = vmatprep.subr.mxu0 0.0
    %1436 = vmatpush1.msra.mxu0 0.0
    %1437 = vmatprep.subr.mxu0 0.0
    %1438 = vmatpush1.msra.mxu0 0.0
    %1439 = vmatprep.subr.mxu0 0.0
    %1440 = vmatpush1.msra.mxu0 0.0
    %1441 = vmatprep.subr.mxu0 0.0
    %1442 = vmatpush1.msra.mxu0 0.0
    %1443 = vmatprep.subr.mxu0 0.0
    %1444 = vmatpush1.msra.mxu0 0.0
    %1445 = vmatprep.subr.mxu0 0.0
    %1446 = vmatpush1.msra.mxu0 0.0
    %1447 = vmatprep.subr.mxu0 0.0
    %1448 = vmatpush1.msra.mxu0 0.0
    %1449 = vmatprep.subr.mxu0 0.0
    %1450 = vmatpush1.msra.mxu0 0.0
    %1451 = vmatprep.subr.mxu0 0.0
    %1452 = vmatpush1.msra.mxu0 0.0
    %1453 = vmatprep.subr.mxu0 0.0
    %1454 = vmatpush1.msra.mxu0 0.0
    %1455 = vmatprep.subr.mxu0 0.0
    %1456 = vmatpush1.msra.mxu0 0.0
    %1457 = vmatprep.subr.mxu0 0.0
    %1458 = vmatpush1.msra.mxu0 0.0
    %1459 = vmatprep.subr.mxu0 0.0
    %1460 = vmatpush1.msra.mxu0 0.0
    %1461 = vmatprep.subr.mxu0 0.0
    %1462 = vmatpush1.msra.mxu0 0.0
    %1463 = vmatprep.subr.mxu0 0.0
    %1464 = vmatpush1.msra.mxu0 0.0
    %1465 = vmatprep.subr.mxu0 0.0
    %1466 = vmatpush1.msra.mxu0 0.0
    %1467 = vmatprep.subr.mxu0 0.0
    %1468 = vmatpush1.msra.mxu0 0.0
    %1469 = vmatprep.subr.mxu0 0.0
    %1470 = vmatpush1.msra.mxu0 0.0
    %1471 = vmatprep.subr.mxu0 0.0
    %1472 = vmatpush1.msra.mxu0 0.0
    %1473 = vmatprep.subr.mxu0 0.0
    %1474 = vmatpush1.msra.mxu0 0.0
    %1475 = vmatprep.subr.mxu0 0.0
    %1476 = vmatpush1.msra.mxu0 0.0
    %1477 = vmatprep.subr.mxu0 0.0
    %1478 = vmatpush1.msra.mxu0 0.0
    %1479 = vmatprep.subr.mxu0 0.0
    %1480 = vmatpush1.msra.mxu0 0.0
    %1481 = vmatprep.subr.mxu0 0.0
    %1482 = vmatpush1.msra.mxu0 0.0
    %1483 = vmatprep.subr.mxu0 0.0
    %1484 = vmatpush1.msra.mxu0 0.0
    %1485 = vmatprep.subr.mxu0 0.0
    %1486 = vmatpush1.msra.mxu0 0.0
    %1487 = vmatprep.subr.mxu0 0.0
    %1488 = vmatpush1.msra.mxu0 0.0
    %1489 = vmatprep.mubr.f32.mxu0 0.0
    %1490 = vmatmul.mubr.f32.gmra.mrb[0].mxu0 %v1423
    %v1491 = vpop.f32.mrb[0].mxu0
    %v1492 = vadd.f32 0.0, %v1491
    %v1493 = vpop.f32.mrb[0].mxu0
    %1494 = vdwg.mxu0
    %1495 = vst.msk [vmem:[#allocation3 + $0x8] sm:$0xff] %vm295, %v1492
    %v1496 = vld [vmem:[#allocation2 + $0x28] sm:$0xff]
    %s1497 = scalar_lea.vmem [#allocation13], 24
    %1498 = vst.msk [vmem:[%s1497] sm:$0xff] %vm376, %v1496
    %1499 = vrot.lane.b32.xlu0 %v287, 88
    %v1500 = vpop.permute.xlu0 %1499
    %1501 = vrot.lane.b32.xlu0 %v292, 88
    %v1502 = vpop.permute.xlu0 %1501
    %v1506 = vsel %vm376, %v1496, 0
    %1508 = vmatprep.subr.mxu0 0.0
    %1509 = vmatpush1.msra.mxu0 %v1500
    %1510 = vmatprep.subr.mxu0 0.0
    %1511 = vmatpush1.msra.mxu0 %v1502
    %1512 = vmatprep.subr.mxu0 0.0
    %1513 = vmatpush1.msra.mxu0 0.0
    %1514 = vmatprep.subr.mxu0 0.0
    %1515 = vmatpush1.msra.mxu0 0.0
    %1516 = vmatprep.subr.mxu0 0.0
    %1517 = vmatpush1.msra.mxu0 0.0
    %1518 = vmatprep.subr.mxu0 0.0
    %1519 = vmatpush1.msra.mxu0 0.0
    %1520 = vmatprep.subr.mxu0 0.0
    %1521 = vmatpush1.msra.mxu0 0.0
    %1522 = vmatprep.subr.mxu0 0.0
    %1523 = vmatpush1.msra.mxu0 0.0
    %1524 = vmatprep.subr.mxu0 0.0
    %1525 = vmatpush1.msra.mxu0 0.0
    %1526 = vmatprep.subr.mxu0 0.0
    %1527 = vmatpush1.msra.mxu0 0.0
    %1528 = vmatprep.subr.mxu0 0.0
    %1529 = vmatpush1.msra.mxu0 0.0
    %1530 = vmatprep.subr.mxu0 0.0
    %1531 = vmatpush1.msra.mxu0 0.0
    %1532 = vmatprep.subr.mxu0 0.0
    %1533 = vmatpush1.msra.mxu0 0.0
    %1534 = vmatprep.subr.mxu0 0.0
    %1535 = vmatpush1.msra.mxu0 0.0
    %1536 = vmatprep.subr.mxu0 0.0
    %1537 = vmatpush1.msra.mxu0 0.0
    %1538 = vmatprep.subr.mxu0 0.0
    %1539 = vmatpush1.msra.mxu0 0.0
    %1540 = vmatprep.subr.mxu0 0.0
    %1541 = vmatpush1.msra.mxu0 0.0
    %1542 = vmatprep.subr.mxu0 0.0
    %1543 = vmatpush1.msra.mxu0 0.0
    %1544 = vmatprep.subr.mxu0 0.0
    %1545 = vmatpush1.msra.mxu0 0.0
    %1546 = vmatprep.subr.mxu0 0.0
    %1547 = vmatpush1.msra.mxu0 0.0
    %1548 = vmatprep.subr.mxu0 0.0
    %1549 = vmatpush1.msra.mxu0 0.0
    %1550 = vmatprep.subr.mxu0 0.0
    %1551 = vmatpush1.msra.mxu0 0.0
    %1552 = vmatprep.subr.mxu0 0.0
    %1553 = vmatpush1.msra.mxu0 0.0
    %1554 = vmatprep.subr.mxu0 0.0
    %1555 = vmatpush1.msra.mxu0 0.0
    %1556 = vmatprep.subr.mxu0 0.0
    %1557 = vmatpush1.msra.mxu0 0.0
    %1558 = vmatprep.subr.mxu0 0.0
    %1559 = vmatpush1.msra.mxu0 0.0
    %1560 = vmatprep.subr.mxu0 0.0
    %1561 = vmatpush1.msra.mxu0 0.0
    %1562 = vmatprep.subr.mxu0 0.0
    %1563 = vmatpush1.msra.mxu0 0.0
    %1564 = vmatprep.subr.mxu0 0.0
    %1565 = vmatpush1.msra.mxu0 0.0
    %1566 = vmatprep.subr.mxu0 0.0
    %1567 = vmatpush1.msra.mxu0 0.0
    %1568 = vmatprep.subr.mxu0 0.0
    %1569 = vmatpush1.msra.mxu0 0.0
    %1570 = vmatprep.subr.mxu0 0.0
    %1571 = vmatpush1.msra.mxu0 0.0
    %1572 = vmatprep.mubr.f32.mxu0 0.0
    %1573 = vmatmul.mubr.f32.gmra.mrb[0].mxu0 %v1506
    %v1574 = vpop.f32.mrb[0].mxu0
    %v1575 = vadd.f32 0.0, %v1574
    %v1576 = vpop.f32.mrb[0].mxu0
    %1577 = vdwg.mxu0
    %1579 = vrot.lane.b32.xlu0 %v1575, 8
    %v1580 = vpop.permute.xlu0 %1579
    %1582 = vst.msk [vmem:[#allocation3 + $0x8] sm:$0xff] %vm1235, %v1580
    %v1583 = vld [vmem:[#allocation2 + $0x30] sm:$0xff]
    %s1584 = scalar_lea.vmem [#allocation13], 40
    %1585 = vst.msk [vmem:[%s1584] sm:$0xff] %vm376, %v1583
    %1586 = vrot.lane.b32.xlu0 %v287, 80
    %v1587 = vpop.permute.xlu0 %1586
    %1588 = vrot.lane.b32.xlu0 %v292, 80
    %v1589 = vpop.permute.xlu0 %1588
    %v1593 = vsel %vm376, %v1583, 0
    %1595 = vmatprep.subr.mxu0 0.0
    %1596 = vmatpush1.msra.mxu0 %v1587
    %1597 = vmatprep.subr.mxu0 0.0
    %1598 = vmatpush1.msra.mxu0 %v1589
    %1599 = vmatprep.subr.mxu0 0.0
    %1600 = vmatpush1.msra.mxu0 0.0
    %1601 = vmatprep.subr.mxu0 0.0
    %1602 = vmatpush1.msra.mxu0 0.0
    %1603 = vmatprep.subr.mxu0 0.0
    %1604 = vmatpush1.msra.mxu0 0.0
    %1605 = vmatprep.subr.mxu0 0.0
    %1606 = vmatpush1.msra.mxu0 0.0
    %1607 = vmatprep.subr.mxu0 0.0
    %1608 = vmatpush1.msra.mxu0 0.0
    %1609 = vmatprep.subr.mxu0 0.0
    %1610 = vmatpush1.msra.mxu0 0.0
    %1611 = vmatprep.subr.mxu0 0.0
    %1612 = vmatpush1.msra.mxu0 0.0
    %1613 = vmatprep.subr.mxu0 0.0
    %1614 = vmatpush1.msra.mxu0 0.0
    %1615 = vmatprep.subr.mxu0 0.0
    %1616 = vmatpush1.msra.mxu0 0.0
    %1617 = vmatprep.subr.mxu0 0.0
    %1618 = vmatpush1.msra.mxu0 0.0
    %1619 = vmatprep.subr.mxu0 0.0
    %1620 = vmatpush1.msra.mxu0 0.0
    %1621 = vmatprep.subr.mxu0 0.0
    %1622 = vmatpush1.msra.mxu0 0.0
    %1623 = vmatprep.subr.mxu0 0.0
    %1624 = vmatpush1.msra.mxu0 0.0
    %1625 = vmatprep.subr.mxu0 0.0
    %1626 = vmatpush1.msra.mxu0 0.0
    %1627 = vmatprep.subr.mxu0 0.0
    %1628 = vmatpush1.msra.mxu0 0.0
    %1629 = vmatprep.subr.mxu0 0.0
    %1630 = vmatpush1.msra.mxu0 0.0
    %1631 = vmatprep.subr.mxu0 0.0
    %1632 = vmatpush1.msra.mxu0 0.0
    %1633 = vmatprep.subr.mxu0 0.0
    %1634 = vmatpush1.msra.mxu0 0.0
    %1635 = vmatprep.subr.mxu0 0.0
    %1636 = vmatpush1.msra.mxu0 0.0
    %1637 = vmatprep.subr.mxu0 0.0
    %1638 = vmatpush1.msra.mxu0 0.0
    %1639 = vmatprep.subr.mxu0 0.0
    %1640 = vmatpush1.msra.mxu0 0.0
    %1641 = vmatprep.subr.mxu0 0.0
    %1642 = vmatpush1.msra.mxu0 0.0
    %1643 = vmatprep.subr.mxu0 0.0
    %1644 = vmatpush1.msra.mxu0 0.0
    %1645 = vmatprep.subr.mxu0 0.0
    %1646 = vmatpush1.msra.mxu0 0.0
    %1647 = vmatprep.subr.mxu0 0.0
    %1648 = vmatpush1.msra.mxu0 0.0
    %1649 = vmatprep.subr.mxu0 0.0
    %1650 = vmatpush1.msra.mxu0 0.0
    %1651 = vmatprep.subr.mxu0 0.0
    %1652 = vmatpush1.msra.mxu0 0.0
    %1653 = vmatprep.subr.mxu0 0.0
    %1654 = vmatpush1.msra.mxu0 0.0
    %1655 = vmatprep.subr.mxu0 0.0
    %1656 = vmatpush1.msra.mxu0 0.0
    %1657 = vmatprep.subr.mxu0 0.0
    %1658 = vmatpush1.msra.mxu0 0.0
    %1659 = vmatprep.mubr.f32.mxu0 0.0
    %1660 = vmatmul.mubr.f32.gmra.mrb[0].mxu0 %v1593
    %v1661 = vpop.f32.mrb[0].mxu0
    %v1662 = vadd.f32 0.0, %v1661
    %v1663 = vpop.f32.mrb[0].mxu0
    %1664 = vdwg.mxu0
    %1666 = vrot.lane.b32.xlu0 %v1662, 16
    %v1667 = vpop.permute.xlu0 %1666
    %1669 = vst.msk [vmem:[#allocation3 + $0x8] sm:$0xff] %vm1323, %v1667
    %v1670 = vld [vmem:[#allocation2 + $0x38] sm:$0xff]
    %s1671 = scalar_lea.vmem [#allocation13], 56
    %1672 = vst.msk [vmem:[%s1671] sm:$0xff] %vm376, %v1670
    %1673 = vrot.lane.b32.xlu0 %v287, 72
    %v1674 = vpop.permute.xlu0 %1673
    %1675 = vrot.lane.b32.xlu0 %v292, 72
    %v1676 = vpop.permute.xlu0 %1675
    %v1680 = vsel %vm376, %v1670, 0
    %1682 = vmatprep.subr.mxu0 0.0
    %1683 = vmatpush1.msra.mxu0 %v1674
    %1684 = vmatprep.subr.mxu0 0.0
    %1685 = vmatpush1.msra.mxu0 %v1676
    %1686 = vmatprep.subr.mxu0 0.0
    %1687 = vmatpush1.msra.mxu0 0.0
    %1688 = vmatprep.subr.mxu0 0.0
    %1689 = vmatpush1.msra.mxu0 0.0
    %1690 = vmatprep.subr.mxu0 0.0
    %1691 = vmatpush1.msra.mxu0 0.0
    %1692 = vmatprep.subr.mxu0 0.0
    %1693 = vmatpush1.msra.mxu0 0.0
    %1694 = vmatprep.subr.mxu0 0.0
    %1695 = vmatpush1.msra.mxu0 0.0
    %1696 = vmatprep.subr.mxu0 0.0
    %1697 = vmatpush1.msra.mxu0 0.0
    %1698 = vmatprep.subr.mxu0 0.0
    %1699 = vmatpush1.msra.mxu0 0.0
    %1700 = vmatprep.subr.mxu0 0.0
    %1701 = vmatpush1.msra.mxu0 0.0
    %1702 = vmatprep.subr.mxu0 0.0
    %1703 = vmatpush1.msra.mxu0 0.0
    %1704 = vmatprep.subr.mxu0 0.0
    %1705 = vmatpush1.msra.mxu0 0.0
    %1706 = vmatprep.subr.mxu0 0.0
    %1707 = vmatpush1.msra.mxu0 0.0
    %1708 = vmatprep.subr.mxu0 0.0
    %1709 = vmatpush1.msra.mxu0 0.0
    %1710 = vmatprep.subr.mxu0 0.0
    %1711 = vmatpush1.msra.mxu0 0.0
    %1712 = vmatprep.subr.mxu0 0.0
    %1713 = vmatpush1.msra.mxu0 0.0
    %1714 = vmatprep.subr.mxu0 0.0
    %1715 = vmatpush1.msra.mxu0 0.0
    %1716 = vmatprep.subr.mxu0 0.0
    %1717 = vmatpush1.msra.mxu0 0.0
    %1718 = vmatprep.subr.mxu0 0.0
    %1719 = vmatpush1.msra.mxu0 0.0
    %1720 = vmatprep.subr.mxu0 0.0
    %1721 = vmatpush1.msra.mxu0 0.0
    %1722 = vmatprep.subr.mxu0 0.0
    %1723 = vmatpush1.msra.mxu0 0.0
    %1724 = vmatprep.subr.mxu0 0.0
    %1725 = vmatpush1.msra.mxu0 0.0
    %1726 = vmatprep.subr.mxu0 0.0
    %1727 = vmatpush1.msra.mxu0 0.0
    %1728 = vmatprep.subr.mxu0 0.0
    %1729 = vmatpush1.msra.mxu0 0.0
    %1730 = vmatprep.subr.mxu0 0.0
    %1731 = vmatpush1.msra.mxu0 0.0
    %1732 = vmatprep.subr.mxu0 0.0
    %1733 = vmatpush1.msra.mxu0 0.0
    %1734 = vmatprep.subr.mxu0 0.0
    %1735 = vmatpush1.msra.mxu0 0.0
    %1736 = vmatprep.subr.mxu0 0.0
    %1737 = vmatpush1.msra.mxu0 0.0
    %1738 = vmatprep.subr.mxu0 0.0
    %1739 = vmatpush1.msra.mxu0 0.0
    %1740 = vmatprep.subr.mxu0 0.0
    %1741 = vmatpush1.msra.mxu0 0.0
    %1742 = vmatprep.subr.mxu0 0.0
    %1743 = vmatpush1.msra.mxu0 0.0
    %1744 = vmatprep.subr.mxu0 0.0
    %1745 = vmatpush1.msra.mxu0 0.0
    %1746 = vmatprep.mubr.f32.mxu0 0.0
    %1747 = vmatmul.mubr.f32.gmra.mrb[0].mxu0 %v1680
    %v1748 = vpop.f32.mrb[0].mxu0
    %v1749 = vadd.f32 0.0, %v1748
    %v1750 = vpop.f32.mrb[0].mxu0
    %1751 = vdwg.mxu0
    %1753 = vrot.lane.b32.xlu0 %v1749, 24
    %v1754 = vpop.permute.xlu0 %1753
    %1756 = vst.msk [vmem:[#allocation3 + $0x8] sm:$0xff] %vm1411, %v1754
    %v1757 = vld [vmem:[#allocation3] sm:$0xff]
    %v1758 = vld [vmem:[#allocation3 + $0x8] sm:$0xff]
    %v1759 = vlaneseq
    %v1760 = vshrl.u32 %v1759, 7
    %v1761 = vsub.s32 2, %v1760
    %v1762 = vrot.slane %v106, %v1761
    %v1764 = vsel %vm112, %v1757, 0
    %v1767 = vsel %vm112, %v1758, 0
    %1769 = vmatprep.subr.mxu0 0.0
    %1770 = vmatpush1.msra.mxu0 %v90
    %1771 = vmatprep.subr.mxu0 0.0
    %1772 = vmatpush1.msra.mxu0 %v91
    %1773 = vmatprep.subr.mxu0 0.0
    %1774 = vmatpush1.msra.mxu0 %v92
    %1775 = vmatprep.subr.mxu0 0.0
    %1776 = vmatpush1.msra.mxu0 %v93
    %1777 = vmatprep.subr.mxu0 0.0
    %1778 = vmatpush1.msra.mxu0 0.0
    %1779 = vmatprep.subr.mxu0 0.0
    %1780 = vmatpush1.msra.mxu0 0.0
    %1781 = vmatprep.subr.mxu0 0.0
    %1782 = vmatpush1.msra.mxu0 0.0
    %1783 = vmatprep.subr.mxu0 0.0
    %1784 = vmatpush1.msra.mxu0 0.0
    %1785 = vmatprep.subr.mxu0 0.0
    %1786 = vmatpush1.msra.mxu0 0.0
    %1787 = vmatprep.subr.mxu0 0.0
    %1788 = vmatpush1.msra.mxu0 0.0
    %1789 = vmatprep.subr.mxu0 0.0
    %1790 = vmatpush1.msra.mxu0 0.0
    %1791 = vmatprep.subr.mxu0 0.0
    %1792 = vmatpush1.msra.mxu0 0.0
    %1793 = vmatprep.subr.mxu0 0.0
    %1794 = vmatpush1.msra.mxu0 0.0
    %1795 = vmatprep.subr.mxu0 0.0
    %1796 = vmatpush1.msra.mxu0 0.0
    %1797 = vmatprep.subr.mxu0 0.0
    %1798 = vmatpush1.msra.mxu0 0.0
    %1799 = vmatprep.subr.mxu0 0.0
    %1800 = vmatpush1.msra.mxu0 0.0
    %1801 = vmatprep.subr.mxu0 0.0
    %1802 = vmatpush1.msra.mxu0 0.0
    %1803 = vmatprep.subr.mxu0 0.0
    %1804 = vmatpush1.msra.mxu0 0.0
    %1805 = vmatprep.subr.mxu0 0.0
    %1806 = vmatpush1.msra.mxu0 0.0
    %1807 = vmatprep.subr.mxu0 0.0
    %1808 = vmatpush1.msra.mxu0 0.0
    %1809 = vmatprep.subr.mxu0 0.0
    %1810 = vmatpush1.msra.mxu0 0.0
    %1811 = vmatprep.subr.mxu0 0.0
    %1812 = vmatpush1.msra.mxu0 0.0
    %1813 = vmatprep.subr.mxu0 0.0
    %1814 = vmatpush1.msra.mxu0 0.0
    %1815 = vmatprep.subr.mxu0 0.0
    %1816 = vmatpush1.msra.mxu0 0.0
    %1817 = vmatprep.subr.mxu0 0.0
    %1818 = vmatpush1.msra.mxu0 0.0
    %1819 = vmatprep.subr.mxu0 0.0
    %1820 = vmatpush1.msra.mxu0 0.0
    %1821 = vmatprep.subr.mxu0 0.0
    %1822 = vmatpush1.msra.mxu0 0.0
    %1823 = vmatprep.subr.mxu0 0.0
    %1824 = vmatpush1.msra.mxu0 0.0
    %1825 = vmatprep.subr.mxu0 0.0
    %1826 = vmatpush1.msra.mxu0 0.0
    %1827 = vmatprep.subr.mxu0 0.0
    %1828 = vmatpush1.msra.mxu0 0.0
    %1829 = vmatprep.subr.mxu0 0.0
    %1830 = vmatpush1.msra.mxu0 0.0
    %1831 = vmatprep.subr.mxu0 0.0
    %1832 = vmatpush1.msra.mxu0 0.0
    %1833 = vmatprep.mubr.f32.mxu0 0.0
    %1834 = vmatmul.mubr.f32.gmra.mrb[0].mxu0 %v1764
    %v1835 = vpop.f32.mrb[0].mxu0
    %v1836 = vadd.f32 %v1762, %v1835
    %v1837 = vpop.f32.mrb[0].mxu0
    %1838 = vmatprep.mubr.f32.mxu0 0.0
    %1839 = vmatmul.mubr.f32.gmra.mrb[0].mxu0 %v1767
    %v1840 = vpop.f32.mrb[0].mxu0
    %v1841 = vadd.f32 %v1762, %v1840
    %v1842 = vpop.f32.mrb[0].mxu0
    %1843 = vdwg.mxu0
    %v1844 = vadd.f32 %v1836, %v76
    %v1845 = vadd.f32 %v1841, %v77
    %v1846 = vsel %vm112, %v1844, 0.0
    %1847 = vadd.xlane.f32.xlu0 %v1846
    %v1848 = vpop.xlane.xlu0 %1847
    %v1849 = vsel %vm112, %v1845, 0.0
    %1850 = vadd.xlane.f32.xlu0 %v1849
    %v1851 = vpop.xlane.xlu0 %1850
    %v1852 = vrcp.pop 32.0
    %v1853 = vmul.f32 %v1848, %v1852
    %v1854 = vmul.f32 %v1851, %v1852
    %v1855 = vsub.f32 %v1844, %v1853
    %v1856 = vsub.f32 %v1845, %v1854
    %v1857 = vmul.f32 %v1855, %v1855
    %v1858 = vmul.f32 %v1856, %v1856
    %v1859 = vsel %vm112, %v1857, 0.0
    %1860 = vadd.xlane.f32.xlu0 %v1859
    %v1861 = vpop.xlane.xlu0 %1860
    %v1862 = vsel %vm112, %v1858, 0.0
    %1863 = vadd.xlane.f32.xlu0 %v1862
    %v1864 = vpop.xlane.xlu0 %1863
    %v1865 = vmul.f32 %v1861, %v1852
    %v1866 = vmul.f32 %v1864, %v1852
    %v1867 = vadd.f32 %v1865, 1e-05
    %v1868 = vadd.f32 %v1866, 1e-05
    %v1869 = vrsqrt.pop %v1867
    %v1870 = vrsqrt.pop %v1868
    %v1871 = vmul.f32 %v1855, %v1869
    %v1872 = vmul.f32 %v1856, %v1870
    %v1873 = vlaneseq
    %v1874 = vshrl.u32 %v1873, 7
    %v1875 = vsub.s32 3, %v1874
    %v1876 = vrot.slane %v106, %v1875
    %v1877 = vmul.f32 %v1871, %v1876
    %v1878 = vmul.f32 %v1872, %v1876
    %v1879 = vlaneseq
    %v1880 = vshrl.u32 %v1879, 7
    %v1881 = vsub.s32 4, %v1880
    %v1882 = vrot.slane %v106, %v1881
    %v1883 = vadd.f32 %v1877, %v1882
    %v1884 = vadd.f32 %v1878, %v1882
    %v1885 = vlaneseq
    %v1886 = vshrl.u32 %v1885, 7
    %v1887 = vsub.s32 5, %v1886
    %v1888 = vrot.slane %v106, %v1887
    %v1890 = vsel %vm112, %v1883, 0
    %v1893 = vsel %vm112, %v1884, 0
    %1895 = vmatprep.subr.mxu0 0.0
    %1896 = vmatpush1.msra.mxu0 %v94
    %1897 = vmatprep.subr.mxu0 0.0
    %1898 = vmatpush1.msra.mxu0 %v95
    %1899 = vmatprep.subr.mxu0 0.0
    %1900 = vmatpush1.msra.mxu0 %v96
    %1901 = vmatprep.subr.mxu0 0.0
    %1902 = vmatpush1.msra.mxu0 %v97
    %1903 = vmatprep.subr.mxu0 0.0
    %1904 = vmatpush1.msra.mxu0 0.0
    %1905 = vmatprep.subr.mxu0 0.0
    %1906 = vmatpush1.msra.mxu0 0.0
    %1907 = vmatprep.subr.mxu0 0.0
    %1908 = vmatpush1.msra.mxu0 0.0
    %1909 = vmatprep.subr.mxu0 0.0
    %1910 = vmatpush1.msra.mxu0 0.0
    %1911 = vmatprep.subr.mxu0 0.0
    %1912 = vmatpush1.msra.mxu0 0.0
    %1913 = vmatprep.subr.mxu0 0.0
    %1914 = vmatpush1.msra.mxu0 0.0
    %1915 = vmatprep.subr.mxu0 0.0
    %1916 = vmatpush1.msra.mxu0 0.0
    %1917 = vmatprep.subr.mxu0 0.0
    %1918 = vmatpush1.msra.mxu0 0.0
    %1919 = vmatprep.subr.mxu0 0.0
    %1920 = vmatpush1.msra.mxu0 0.0
    %1921 = vmatprep.subr.mxu0 0.0
    %1922 = vmatpush1.msra.mxu0 0.0
    %1923 = vmatprep.subr.mxu0 0.0
    %1924 = vmatpush1.msra.mxu0 0.0
    %1925 = vmatprep.subr.mxu0 0.0
    %1926 = vmatpush1.msra.mxu0 0.0
    %1927 = vmatprep.subr.mxu0 0.0
    %1928 = vmatpush1.msra.mxu0 0.0
    %1929 = vmatprep.subr.mxu0 0.0
    %1930 = vmatpush1.msra.mxu0 0.0
    %1931 = vmatprep.subr.mxu0 0.0
    %1932 = vmatpush1.msra.mxu0 0.0
    %1933 = vmatprep.subr.mxu0 0.0
    %1934 = vmatpush1.msra.mxu0 0.0
    %1935 = vmatprep.subr.mxu0 0.0
    %1936 = vmatpush1.msra.mxu0 0.0
    %1937 = vmatprep.subr.mxu0 0.0
    %1938 = vmatpush1.msra.mxu0 0.0
    %1939 = vmatprep.subr.mxu0 0.0
    %1940 = vmatpush1.msra.mxu0 0.0
    %1941 = vmatprep.subr.mxu0 0.0
    %1942 = vmatpush1.msra.mxu0 0.0
    %1943 = vmatprep.subr.mxu0 0.0
    %1944 = vmatpush1.msra.mxu0 0.0
    %1945 = vmatprep.subr.mxu0 0.0
    %1946 = vmatpush1.msra.mxu0 0.0
    %1947 = vmatprep.subr.mxu0 0.0
    %1948 = vmatpush1.msra.mxu0 0.0
    %1949 = vmatprep.subr.mxu0 0.0
    %1950 = vmatpush1.msra.mxu0 0.0
    %1951 = vmatprep.subr.mxu0 0.0
    %1952 = vmatpush1.msra.mxu0 0.0
    %1953 = vmatprep.subr.mxu0 0.0
    %1954 = vmatpush1.msra.mxu0 0.0
    %1955 = vmatprep.subr.mxu0 0.0
    %1956 = vmatpush1.msra.mxu0 0.0
    %1957 = vmatprep.subr.mxu0 0.0
    %1958 = vmatpush1.msra.mxu0 0.0
    %1959 = vmatprep.mubr.f32.mxu0 0.0
    %1960 = vmatmul.mubr.f32.gmra.mrb[0].mxu0 %v1890
    %v1961 = vpop.f32.mrb[0].mxu0
    %v1962 = vadd.f32 %v1888, %v1961
    %v1963 = vpop.f32.mrb[0].mxu0
    %1964 = vmatprep.mubr.f32.mxu0 0.0
    %1965 = vmatmul.mubr.f32.gmra.mrb[0].mxu0 %v1893
    %v1966 = vpop.f32.mrb[0].mxu0
    %v1967 = vadd.f32 %v1888, %v1966
    %v1968 = vpop.f32.mrb[0].mxu0
    %1969 = vdwg.mxu0
    %v1970 = vmax.f32 %v1962, 0.0
    %v1971 = vmax.f32 %v1967, 0.0
    %v1972 = vlaneseq
    %v1973 = vshrl.u32 %v1972, 7
    %v1974 = vsub.s32 6, %v1973
    %v1975 = vrot.slane %v106, %v1974
    %vm1976 = vcmask 523264
    %v1978 = vsel %vm1976, %v1970, 0
    %v1981 = vsel %vm1976, %v1971, 0
    %1983 = vmatprep.subr.mxu0 0.0
    %1984 = vmatpush1.msra.mxu0 %v98
    %1985 = vmatprep.subr.mxu0 0.0
    %1986 = vmatpush1.msra.mxu0 %v99
    %1987 = vmatprep.subr.mxu0 0.0
    %1988 = vmatpush1.msra.mxu0 %v100
    %1989 = vmatprep.subr.mxu0 0.0
    %1990 = vmatpush1.msra.mxu0 %v101
    %1991 = vmatprep.subr.mxu0 0.0
    %1992 = vmatpush1.msra.mxu0 %v102
    %1993 = vmatprep.subr.mxu0 0.0
    %1994 = vmatpush1.msra.mxu0 %v103
    %1995 = vmatprep.subr.mxu0 0.0
    %1996 = vmatpush1.msra.mxu0 %v104
    %1997 = vmatprep.subr.mxu0 0.0
    %1998 = vmatpush1.msra.mxu0 %v105
    %1999 = vmatprep.subr.mxu0 0.0
    %2000 = vmatpush1.msra.mxu0 0.0
    %2001 = vmatprep.subr.mxu0 0.0
    %2002 = vmatpush1.msra.mxu0 0.0
    %2003 = vmatprep.subr.mxu0 0.0
    %2004 = vmatpush1.msra.mxu0 0.0
    %2005 = vmatprep.subr.mxu0 0.0
    %2006 = vmatpush1.msra.mxu0 0.0
    %2007 = vmatprep.subr.mxu0 0.0
    %2008 = vmatpush1.msra.mxu0 0.0
    %2009 = vmatprep.subr.mxu0 0.0
    %2010 = vmatpush1.msra.mxu0 0.0
    %2011 = vmatprep.subr.mxu0 0.0
    %2012 = vmatpush1.msra.mxu0 0.0
    %2013 = vmatprep.subr.mxu0 0.0
    %2014 = vmatpush1.msra.mxu0 0.0
    %2015 = vmatprep.subr.mxu0 0.0
    %2016 = vmatpush1.msra.mxu0 0.0
    %2017 = vmatprep.subr.mxu0 0.0
    %2018 = vmatpush1.msra.mxu0 0.0
    %2019 = vmatprep.subr.mxu0 0.0
    %2020 = vmatpush1.msra.mxu0 0.0
    %2021 = vmatprep.subr.mxu0 0.0
    %2022 = vmatpush1.msra.mxu0 0.0
    %2023 = vmatprep.subr.mxu0 0.0
    %2024 = vmatpush1.msra.mxu0 0.0
    %2025 = vmatprep.subr.mxu0 0.0
    %2026 = vmatpush1.msra.mxu0 0.0
    %2027 = vmatprep.subr.mxu0 0.0
    %2028 = vmatpush1.msra.mxu0 0.0
    %2029 = vmatprep.subr.mxu0 0.0
    %2030 = vmatpush1.msra.mxu0 0.0
    %2031 = vmatprep.subr.mxu0 0.0
    %2032 = vmatpush1.msra.mxu0 0.0
    %2033 = vmatprep.subr.mxu0 0.0
    %2034 = vmatpush1.msra.mxu0 0.0
    %2035 = vmatprep.subr.mxu0 0.0
    %2036 = vmatpush1.msra.mxu0 0.0
    %2037 = vmatprep.subr.mxu0 0.0
    %2038 = vmatpush1.msra.mxu0 0.0
    %2039 = vmatprep.subr.mxu0 0.0
    %2040 = vmatpush1.msra.mxu0 0.0
    %2041 = vmatprep.subr.mxu0 0.0
    %2042 = vmatpush1.msra.mxu0 0.0
    %2043 = vmatprep.subr.mxu0 0.0
    %2044 = vmatpush1.msra.mxu0 0.0
    %2045 = vmatprep.subr.mxu0 0.0
    %2046 = vmatpush1.msra.mxu0 0.0
    %2047 = vmatprep.mubr.f32.mxu0 0.0
    %2048 = vmatmul.mubr.f32.gmra.mrb[0].mxu0 %v1978
    %v2049 = vpop.f32.mrb[0].mxu0
    %v2050 = vadd.f32 %v1975, %v2049
    %v2051 = vpop.f32.mrb[0].mxu0
    %2052 = vmatprep.mubr.f32.mxu0 0.0
    %2053 = vmatmul.mubr.f32.gmra.mrb[0].mxu0 %v1981
    %v2054 = vpop.f32.mrb[0].mxu0
    %v2055 = vadd.f32 %v1975, %v2054
    %v2056 = vpop.f32.mrb[0].mxu0
    %2057 = vdwg.mxu0
    %v2058 = vadd.f32 %v2050, %v1883
    %v2059 = vadd.f32 %v2055, %v1884
    %v2060 = vsel %vm112, %v2058, 0.0
    %2061 = vadd.xlane.f32.xlu0 %v2060
    %v2062 = vpop.xlane.xlu0 %2061
    %v2063 = vsel %vm112, %v2059, 0.0
    %2064 = vadd.xlane.f32.xlu0 %v2063
    %v2065 = vpop.xlane.xlu0 %2064
    %v2066 = vmul.f32 %v2062, %v1852
    %v2067 = vmul.f32 %v2065, %v1852
    %v2068 = vsub.f32 %v2058, %v2066
    %v2069 = vsub.f32 %v2059, %v2067
    %v2070 = vmul.f32 %v2068, %v2068
    %v2071 = vmul.f32 %v2069, %v2069
    %v2072 = vsel %vm112, %v2070, 0.0
    %2073 = vadd.xlane.f32.xlu0 %v2072
    %v2074 = vpop.xlane.xlu0 %2073
    %v2075 = vsel %vm112, %v2071, 0.0
    %2076 = vadd.xlane.f32.xlu0 %v2075
    %v2077 = vpop.xlane.xlu0 %2076
    %v2078 = vmul.f32 %v2074, %v1852
    %v2079 = vmul.f32 %v2077, %v1852
    %v2080 = vadd.f32 %v2078, 1e-05
    %v2081 = vadd.f32 %v2079, 1e-05
    %v2082 = vrsqrt.pop %v2080
    %v2083 = vrsqrt.pop %v2081
    %v2084 = vmul.f32 %v2068, %v2082
    %v2085 = vmul.f32 %v2069, %v2083
    %v2086 = vlaneseq
    %v2087 = vshrl.u32 %v2086, 7
    %v2088 = vsub.s32 7, %v2087
    %v2089 = vrot.slane %v106, %v2088
    %v2090 = vmul.f32 %v2084, %v2089
    %v2091 = vmul.f32 %v2085, %v2089
    %v2092 = vlaneseq
    %v2093 = vshrl.u32 %v2092, 7
    %v2094 = vsub.s32 0, %v2093
    %v2095 = vrot.slane %v107, %v2094
    %v2096 = vadd.f32 %v2090, %v2095
    %v2097 = vadd.f32 %v2091, %v2095
    %2098 = vst.msk [vmem:[#allocation12] sm:$0xff] %vm112, %v2096
    %2099 = vst.msk [vmem:[#allocation12 + $0x8] sm:$0xff] %vm112, %v2097
    // Predicated region
    $region34: #{tpu_custom_call.1} parent=1 // pred_check
      _
    $region35: #{tpu_custom_call.1} parent=1 // pred_check_branch
      %2101 = sbr.rel (0) target = $region37
    $region36: #{tpu_custom_call.1} parent=1 // pred_region
      %s2103 = ssub.s32 256, 256
      %2104 = vsyncadd [#allocation6], %s2103
      %s2105 = sshll.u32 [#allocation12], 4
      %s2106 = int_to_ptr.vmem [resolvable:$true] %s2105
      %2111 = dma.vmem_to_hbm [thread:$0]  %s2106, 256, %s4, [#allocation6], 128, 128, 8
    $region37: #{tpu_custom_call.1} parent=1 // pred_fallthru
      _
    // Predicated region
    $region38: #{tpu_custom_call.1} parent=1 // pred_check
      _
    $region39: #{tpu_custom_call.1} parent=1 // pred_check_branch
      %2113 = sbr.rel (0) target = $region41
    $region40: #{tpu_custom_call.1} parent=1 // pred_region
      %s2115 = ssub.s32 1024, 1024
      %2116 = vsyncadd [#allocation14], %s2115
      %s2117 = sshll.u32 [#allocation13], 4
      %s2118 = int_to_ptr.vmem [resolvable:$true] %s2117
      %2123 = dma.vmem_to_hbm [thread:$0]  %s2118, 1024, %s5, [#allocation14], 128, 128, 8
    $region41: #{tpu_custom_call.1} parent=1 // pred_fallthru
      _
    // Predicated region
    $region42: #{tpu_custom_call.1} parent=1 // pred_check
      _
    $region43: #{tpu_custom_call.1} parent=1 // pred_check_branch
      %2125 = sbr.rel (0) target = $region45
    $region44: #{tpu_custom_call.1} parent=1 // pred_region
      %2126 = dma.done [#allocation6], 256
    $region45: #{tpu_custom_call.1} parent=1 // pred_fallthru
      _
    // Predicated region
    $region46: #{tpu_custom_call.1} parent=1 // pred_check
      _
    $region47: #{tpu_custom_call.1} parent=1 // pred_check_branch
      %2128 = sbr.rel (0) target = $region49
    $region48: #{tpu_custom_call.1} parent=1 // pred_region
      %2129 = dma.done [#allocation14], 1024
    $region49: #{tpu_custom_call.1} parent=1 // pred_fallthru
      _
    %2130 = vsyncpa [#allocation5], 1
    %2131 = vsyncpa [#allocation8], 1
    %2132 = vsyncpa [#allocation11], 1
    %2133 = vsyncpa [#allocation6], 1
    %2134 = vsyncpa [#allocation14], 1

</llo_original>
